<compile_context>
chip_gen: v5e
topology: v5e:2x2
jax: 0.10.0
libtpu: 0.0.40
codegen_flags: <defaults>
</compile_context>

<pallas_src>
import jax
import jax.numpy as jnp
from jax.experimental import pallas as pl
from jax.experimental.pallas import tpu as pltpu


IN_FEATURES = 28 * 28
NUM_CLASSES = 10
PADDED_CLASSES = 128  # lane-dense (unmasked) output store


def _round_up(n, m):
    return ((n + m - 1) // m) * m


def ffn_kernel(x_ref,
               w1_ref, b1_ref,
               w2_ref, b2_ref,
               w3_ref, b3_ref,
               w4_ref, b4_ref,
               w5_ref, b5_ref,
               o_ref):
    # x arrives in f32 straight from HBM (no wrapper-side cast pass); cast to
    # bf16 only at the MXU input.  Accumulation / bias / ReLU stay f32.
    x = x_ref[...].astype(jnp.bfloat16)

    # fc1 + relu
    h = jnp.dot(x, w1_ref[...], preferred_element_type=jnp.float32)
    h = jnp.maximum(h + b1_ref[...], 0.0)
    # fc2 + relu
    h = jnp.dot(h.astype(jnp.bfloat16), w2_ref[...],
                preferred_element_type=jnp.float32)
    h = jnp.maximum(h + b2_ref[...], 0.0)
    # fc3 + relu
    h = jnp.dot(h.astype(jnp.bfloat16), w3_ref[...],
                preferred_element_type=jnp.float32)
    h = jnp.maximum(h + b3_ref[...], 0.0)
    # fc4 + relu
    h = jnp.dot(h.astype(jnp.bfloat16), w4_ref[...],
                preferred_element_type=jnp.float32)
    h = jnp.maximum(h + b4_ref[...], 0.0)
    # fc5 (logits, padded to 128 lanes; no activation)
    h = jnp.dot(h.astype(jnp.bfloat16), w5_ref[...],
                preferred_element_type=jnp.float32)
    # bf16 store: halves writeback bytes, keeps the lane-dense 128-wide vst.
    o_ref[...] = (h + b5_ref[...]).astype(o_ref.dtype)


def feed_forward_net(x, params, tile_b=1024):
    """x: (B, 1, 28, 28) float32 NCHW. Returns logits (B, 10) float32."""
    B = x.shape[0]
    x_flat = x.reshape(B, IN_FEATURES)  # torch.flatten(x, 1); free, stays f32

    (w1, b1), (w2, b2), (w3, b3), (w4, b4), (w5, b5) = params
    num_classes = w5.shape[1]

    # Weights to bf16 (tiny, one-time).  Logits dim padded 10 -> 128 so the
    # output store is lane-dense; bias stays f32 for the f32 epilogue.
    w1b, w2b, w3b, w4b = (w.astype(jnp.bfloat16) for w in (w1, w2, w3, w4))
    w5p = jnp.pad(w5.astype(jnp.bfloat16),
                  ((0, 0), (0, PADDED_CLASSES - num_classes)))
    b5p = jnp.pad(b5, ((0, 0), (0, PADDED_CLASSES - num_classes)))

    # Batch tile: >=128 rows and a multiple of 16 to amortize per-step
    # overhead; capped at ceil(B/2) so the grid has >=2 steps (both v7x TCs
    # get work) whenever B allows it; clamped near B for tiny batches.
    tb = max(128, min(tile_b, _round_up(pl.cdiv(B, 2), 16)))
    tb = min(tb, _round_up(B, 16))
    grid = (pl.cdiv(B, tb),)  # non-divisible trailing block handled by Pallas

    def resident(shape):
        # Weights/biases: constant index_map -> stay resident in VMEM.
        return pl.BlockSpec(shape, lambda i: (0, 0))

    out = pl.pallas_call(
        ffn_kernel,
        out_shape=jax.ShapeDtypeStruct((B, PADDED_CLASSES), jnp.bfloat16),
        grid=grid,
        in_specs=[
            pl.BlockSpec((tb, IN_FEATURES), lambda i: (i, 0)),
            resident(w1b.shape), resident(b1.shape),
            resident(w2b.shape), resident(b2.shape),
            resident(w3b.shape), resident(b3.shape),
            resident(w4b.shape), resident(b4.shape),
            resident(w5p.shape), resident(b5p.shape),
        ],
        out_specs=pl.BlockSpec((tb, PADDED_CLASSES), lambda i: (i, 0)),
        compiler_params=pltpu.CompilerParams(
            dimension_semantics=("parallel",),
            vmem_limit_bytes=64 * 1024 * 1024),
    )(x_flat, w1b, b1, w2b, b2, w3b, b3, w4b, b4, w5p, b5p)

    # Slice off the lane padding; tiny (B, 10) cast back to f32.
    return out[:, :num_classes].astype(jnp.float32)


def init_params(key):
    """Kaiming-normal (fan_out, relu) weights, zero biases.

    PyTorch stores Linear weight as (out, in); kaiming_normal_ with
    mode='fan_out', nonlinearity='relu' gives std = sqrt(2 / out_features).
    We store weights transposed as (in, out) for the x @ W convention; biases
    are kept 2-D (1, out) so they broadcast cleanly inside the kernel.
    """
    dims = [IN_FEATURES, 32, 64, 128, 256, NUM_CLASSES]
    params = []
    for i in range(5):
        key, wk = jax.random.split(key)
        fan_in, fan_out = dims[i], dims[i + 1]
        std = (2.0 / fan_out) ** 0.5
        w = std * jax.random.normal(wk, (fan_in, fan_out), dtype=jnp.float32)
        b = jnp.zeros((1, fan_out), dtype=jnp.float32)
        params.append((w, b))
    return params


if __name__ == "__main__":
    key = jax.random.PRNGKey(0)
    key, xk = jax.random.split(key)

    params = init_params(key)
    # B=256 -> tb=128, grid=(2,): exercises the pipelined multi-step path
    # (and both TensorCores on v7x) while staying small.
    B = 256
    x = jax.random.normal(xk, (B, 1, 28, 28), dtype=jnp.float32)

    out = feed_forward_net(x, params)
    out = jax.block_until_ready(out)

    # Plain-JAX reference mirroring the kernel numerics exactly: bf16 MXU
    # inputs, f32 accumulation / bias / ReLU, bf16 final store.
    def ref(x, params):
        h = x.reshape(x.shape[0], -1)
        n = len(params)
        for i, (w, b) in enumerate(params):
            h = jnp.dot(h.astype(jnp.bfloat16), w.astype(jnp.bfloat16),
                        preferred_element_type=jnp.float32) + b
            if i < n - 1:
                h = jnp.maximum(h, 0.0)
        return h.astype(jnp.bfloat16).astype(jnp.float32)

    ref_out = ref(x, params)
    assert out.shape == (B, NUM_CLASSES)
    assert jnp.allclose(out, ref_out, atol=1e-2, rtol=1e-2)

    print("KERNEL_OK")
</pallas_src>

<mosaic_0001>
module attributes {stable_mosaic.version = 11 : i64} {
  func.func @ffn_kernel(%arg0: i32, %arg1: memref<128x784xf32, #tpu.memory_space<vmem>>, %arg2: memref<784x32xbf16, #tpu.memory_space<vmem>>, %arg3: memref<1x32xf32, #tpu.memory_space<vmem>>, %arg4: memref<32x64xbf16, #tpu.memory_space<vmem>>, %arg5: memref<1x64xf32, #tpu.memory_space<vmem>>, %arg6: memref<64x128xbf16, #tpu.memory_space<vmem>>, %arg7: memref<1x128xf32, #tpu.memory_space<vmem>>, %arg8: memref<128x256xbf16, #tpu.memory_space<vmem>>, %arg9: memref<1x256xf32, #tpu.memory_space<vmem>>, %arg10: memref<256x128xbf16, #tpu.memory_space<vmem>>, %arg11: memref<1x128xf32, #tpu.memory_space<vmem>>, %arg12: memref<128x128xbf16, #tpu.memory_space<vmem>>) attributes {dimension_semantics = [#tpu.dimension_semantics<parallel>], iteration_bounds = array<i64: 2>, scalar_prefetch = 0 : i64, scratch_operands = 0 : i64, tpu.core_type = #tpu.core_type<tc>, window_params = [{transform_indices = @transform_0, window_bounds = array<i64: 128, 784>}, {pipeline_mode = #tpu.pipeline_mode<synchronous>, transform_indices = @transform_1, window_bounds = array<i64: 784, 32>}, {pipeline_mode = #tpu.pipeline_mode<synchronous>, transform_indices = @transform_2, window_bounds = array<i64: 1, 32>}, {pipeline_mode = #tpu.pipeline_mode<synchronous>, transform_indices = @transform_3, window_bounds = array<i64: 32, 64>}, {pipeline_mode = #tpu.pipeline_mode<synchronous>, transform_indices = @transform_4, window_bounds = array<i64: 1, 64>}, {pipeline_mode = #tpu.pipeline_mode<synchronous>, transform_indices = @transform_5, window_bounds = array<i64: 64, 128>}, {pipeline_mode = #tpu.pipeline_mode<synchronous>, transform_indices = @transform_6, window_bounds = array<i64: 1, 128>}, {pipeline_mode = #tpu.pipeline_mode<synchronous>, transform_indices = @transform_7, window_bounds = array<i64: 128, 256>}, {pipeline_mode = #tpu.pipeline_mode<synchronous>, transform_indices = @transform_8, window_bounds = array<i64: 1, 256>}, {pipeline_mode = #tpu.pipeline_mode<synchronous>, transform_indices = @transform_9, window_bounds = array<i64: 256, 128>}, {pipeline_mode = #tpu.pipeline_mode<synchronous>, transform_indices = @transform_10, window_bounds = array<i64: 1, 128>}, {transform_indices = @transform_11, window_bounds = array<i64: 128, 128>}]} {
    %c0 = arith.constant 0 : index
    %c0_0 = arith.constant 0 : index
    %0 = vector.load %arg1[%c0, %c0_0] : memref<128x784xf32, #tpu.memory_space<vmem>>, vector<128x784xf32>
    %1 = arith.truncf %0 : vector<128x784xf32> to vector<128x784xbf16>
    %c0_1 = arith.constant 0 : index
    %c0_2 = arith.constant 0 : index
    %2 = vector.load %arg2[%c0_1, %c0_2] : memref<784x32xbf16, #tpu.memory_space<vmem>>, vector<784x32xbf16>
    %cst = arith.constant dense<0.000000e+00> : vector<128x32xf32>
    %3 = tpu.matmul %1, %2, %cst {dimension_numbers = #tpu.dot_dimension_numbers<[1], [0], [0], [1], [0, 0, 1, 1], [], []>} : vector<128x784xbf16>, vector<784x32xbf16>, vector<128x32xf32> -> vector<128x32xf32>
    %c0_3 = arith.constant 0 : index
    %c0_4 = arith.constant 0 : index
    %4 = vector.load %arg3[%c0_3, %c0_4] : memref<1x32xf32, #tpu.memory_space<vmem>>, vector<1x32xf32>
    %5 = vector.broadcast %4 : vector<1x32xf32> to vector<128x32xf32>
    %6 = arith.addf %3, %5 : vector<128x32xf32>
    %cst_5 = arith.constant 0.000000e+00 : f32
    %7 = vector.broadcast %cst_5 : f32 to vector<128x32xf32>
    %8 = arith.maximumf %6, %7 : vector<128x32xf32>
    %9 = arith.truncf %8 : vector<128x32xf32> to vector<128x32xbf16>
    %c0_6 = arith.constant 0 : index
    %c0_7 = arith.constant 0 : index
    %10 = vector.load %arg4[%c0_6, %c0_7] : memref<32x64xbf16, #tpu.memory_space<vmem>>, vector<32x64xbf16>
    %cst_8 = arith.constant dense<0.000000e+00> : vector<128x64xf32>
    %11 = tpu.matmul %9, %10, %cst_8 {dimension_numbers = #tpu.dot_dimension_numbers<[1], [0], [0], [1], [0, 0, 1, 1], [], []>} : vector<128x32xbf16>, vector<32x64xbf16>, vector<128x64xf32> -> vector<128x64xf32>
    %c0_9 = arith.constant 0 : index
    %c0_10 = arith.constant 0 : index
    %12 = vector.load %arg5[%c0_9, %c0_10] : memref<1x64xf32, #tpu.memory_space<vmem>>, vector<1x64xf32>
    %13 = vector.broadcast %12 : vector<1x64xf32> to vector<128x64xf32>
    %14 = arith.addf %11, %13 : vector<128x64xf32>
    %cst_11 = arith.constant 0.000000e+00 : f32
    %15 = vector.broadcast %cst_11 : f32 to vector<128x64xf32>
    %16 = arith.maximumf %14, %15 : vector<128x64xf32>
    %17 = arith.truncf %16 : vector<128x64xf32> to vector<128x64xbf16>
    %c0_12 = arith.constant 0 : index
    %c0_13 = arith.constant 0 : index
    %18 = vector.load %arg6[%c0_12, %c0_13] : memref<64x128xbf16, #tpu.memory_space<vmem>>, vector<64x128xbf16>
    %cst_14 = arith.constant dense<0.000000e+00> : vector<128x128xf32>
    %19 = tpu.matmul %17, %18, %cst_14 {dimension_numbers = #tpu.dot_dimension_numbers<[1], [0], [0], [1], [0, 0, 1, 1], [], []>} : vector<128x64xbf16>, vector<64x128xbf16>, vector<128x128xf32> -> vector<128x128xf32>
    %c0_15 = arith.constant 0 : index
    %c0_16 = arith.constant 0 : index
    %20 = vector.load %arg7[%c0_15, %c0_16] : memref<1x128xf32, #tpu.memory_space<vmem>>, vector<1x128xf32>
    %21 = vector.broadcast %20 : vector<1x128xf32> to vector<128x128xf32>
    %22 = arith.addf %19, %21 : vector<128x128xf32>
    %cst_17 = arith.constant 0.000000e+00 : f32
    %23 = vector.broadcast %cst_17 : f32 to vector<128x128xf32>
    %24 = arith.maximumf %22, %23 : vector<128x128xf32>
    %25 = arith.truncf %24 : vector<128x128xf32> to vector<128x128xbf16>
    %c0_18 = arith.constant 0 : index
    %c0_19 = arith.constant 0 : index
    %26 = vector.load %arg8[%c0_18, %c0_19] : memref<128x256xbf16, #tpu.memory_space<vmem>>, vector<128x256xbf16>
    %cst_20 = arith.constant dense<0.000000e+00> : vector<128x256xf32>
    %27 = tpu.matmul %25, %26, %cst_20 {dimension_numbers = #tpu.dot_dimension_numbers<[1], [0], [0], [1], [0, 0, 1, 1], [], []>} : vector<128x128xbf16>, vector<128x256xbf16>, vector<128x256xf32> -> vector<128x256xf32>
    %c0_21 = arith.constant 0 : index
    %c0_22 = arith.constant 0 : index
    %28 = vector.load %arg9[%c0_21, %c0_22] : memref<1x256xf32, #tpu.memory_space<vmem>>, vector<1x256xf32>
    %29 = vector.broadcast %28 : vector<1x256xf32> to vector<128x256xf32>
    %30 = arith.addf %27, %29 : vector<128x256xf32>
    %cst_23 = arith.constant 0.000000e+00 : f32
    %31 = vector.broadcast %cst_23 : f32 to vector<128x256xf32>
    %32 = arith.maximumf %30, %31 : vector<128x256xf32>
    %33 = arith.truncf %32 : vector<128x256xf32> to vector<128x256xbf16>
    %c0_24 = arith.constant 0 : index
    %c0_25 = arith.constant 0 : index
    %34 = vector.load %arg10[%c0_24, %c0_25] : memref<256x128xbf16, #tpu.memory_space<vmem>>, vector<256x128xbf16>
    %cst_26 = arith.constant dense<0.000000e+00> : vector<128x128xf32>
    %35 = tpu.matmul %33, %34, %cst_26 {dimension_numbers = #tpu.dot_dimension_numbers<[1], [0], [0], [1], [0, 0, 1, 1], [], []>} : vector<128x256xbf16>, vector<256x128xbf16>, vector<128x128xf32> -> vector<128x128xf32>
    %c0_27 = arith.constant 0 : index
    %c0_28 = arith.constant 0 : index
    %36 = vector.load %arg11[%c0_27, %c0_28] : memref<1x128xf32, #tpu.memory_space<vmem>>, vector<1x128xf32>
    %37 = vector.broadcast %36 : vector<1x128xf32> to vector<128x128xf32>
    %38 = arith.addf %35, %37 : vector<128x128xf32>
    %39 = arith.truncf %38 : vector<128x128xf32> to vector<128x128xbf16>
    %c0_29 = arith.constant 0 : index
    %c0_30 = arith.constant 0 : index
    %40 = vector.load %arg12[%c0_29, %c0_30] : memref<128x128xbf16, #tpu.memory_space<vmem>>, vector<128x128xbf16>
    tpu.vector_store %arg12[%c0_29, %c0_30], %39 {strides = array<i32>} : memref<128x128xbf16, #tpu.memory_space<vmem>>, vector<128x128xbf16>,
    return
  }
  func.func @transform_0(%arg0: i32) -> (i32, i32) {
    %c0_i32 = arith.constant 0 : i32
    %c0_i32_0 = arith.constant 0 : i32
    return %arg0, %c0_i32 : i32, i32
  }
  func.func @transform_1(%arg0: i32) -> (i32, i32) {
    %c0_i32 = arith.constant 0 : i32
    %c0_i32_0 = arith.constant 0 : i32
    %c0_i32_1 = arith.constant 0 : i32
    return %c0_i32, %c0_i32_0 : i32, i32
  }
  func.func @transform_2(%arg0: i32) -> (i32, i32) {
    %c0_i32 = arith.constant 0 : i32
    %c0_i32_0 = arith.constant 0 : i32
    %c0_i32_1 = arith.constant 0 : i32
    return %c0_i32, %c0_i32_0 : i32, i32
  }
  func.func @transform_3(%arg0: i32) -> (i32, i32) {
    %c0_i32 = arith.constant 0 : i32
    %c0_i32_0 = arith.constant 0 : i32
    %c0_i32_1 = arith.constant 0 : i32
    return %c0_i32, %c0_i32_0 : i32, i32
  }
  func.func @transform_4(%arg0: i32) -> (i32, i32) {
    %c0_i32 = arith.constant 0 : i32
    %c0_i32_0 = arith.constant 0 : i32
    %c0_i32_1 = arith.constant 0 : i32
    return %c0_i32, %c0_i32_0 : i32, i32
  }
  func.func @transform_5(%arg0: i32) -> (i32, i32) {
    %c0_i32 = arith.constant 0 : i32
    %c0_i32_0 = arith.constant 0 : i32
    %c0_i32_1 = arith.constant 0 : i32
    return %c0_i32, %c0_i32_0 : i32, i32
  }
  func.func @transform_6(%arg0: i32) -> (i32, i32) {
    %c0_i32 = arith.constant 0 : i32
    %c0_i32_0 = arith.constant 0 : i32
    %c0_i32_1 = arith.constant 0 : i32
    return %c0_i32, %c0_i32_0 : i32, i32
  }
  func.func @transform_7(%arg0: i32) -> (i32, i32) {
    %c0_i32 = arith.constant 0 : i32
    %c0_i32_0 = arith.constant 0 : i32
    %c0_i32_1 = arith.constant 0 : i32
    return %c0_i32, %c0_i32_0 : i32, i32
  }
  func.func @transform_8(%arg0: i32) -> (i32, i32) {
    %c0_i32 = arith.constant 0 : i32
    %c0_i32_0 = arith.constant 0 : i32
    %c0_i32_1 = arith.constant 0 : i32
    return %c0_i32, %c0_i32_0 : i32, i32
  }
  func.func @transform_9(%arg0: i32) -> (i32, i32) {
    %c0_i32 = arith.constant 0 : i32
    %c0_i32_0 = arith.constant 0 : i32
    %c0_i32_1 = arith.constant 0 : i32
    return %c0_i32, %c0_i32_0 : i32, i32
  }
  func.func @transform_10(%arg0: i32) -> (i32, i32) {
    %c0_i32 = arith.constant 0 : i32
    %c0_i32_0 = arith.constant 0 : i32
    %c0_i32_1 = arith.constant 0 : i32
    return %c0_i32, %c0_i32_0 : i32, i32
  }
  func.func @transform_11(%arg0: i32) -> (i32, i32) {
    %c0_i32 = arith.constant 0 : i32
    %c0_i32_0 = arith.constant 0 : i32
    return %arg0, %c0_i32 : i32, i32
  }
}

</mosaic_0001>

<llo_original>
// kernel: tpu_custom_call.1
$region0: #{tpu_custom_call.1}
  #allocation0 [shape = 'u32[]', space=smem, size = 0x4, offset = 0x4, fixed_abs, tag = 'smem constant byte address 0x4 - core index']
  #allocation1 [shape = 'u32[72,128]{1,0:T(1,128)}', space=vmem, size = 0x9000, scoped, tag = 'internal scratch']
  %s0 = inlined_call_operand.vmem [shape: f32[256,784], index: 0, kind: input, shape index: {}]
  %s1 = inlined_call_operand.vmem [shape: bf16[784,32], index: 1, kind: input, shape index: {}]
  %s2 = inlined_call_operand.vmem [shape: f32[1,32], index: 2, kind: input, shape index: {}]
  %s3 = inlined_call_operand.vmem [shape: bf16[32,64], index: 3, kind: input, shape index: {}]
  %s4 = inlined_call_operand.vmem [shape: f32[1,64], index: 4, kind: input, shape index: {}]
  %s5 = inlined_call_operand.vmem [shape: bf16[64,128], index: 5, kind: input, shape index: {}]
  %s6 = inlined_call_operand.vmem [shape: f32[1,128], index: 6, kind: input, shape index: {}]
  %s7 = inlined_call_operand.vmem [shape: bf16[128,256], index: 7, kind: input, shape index: {}]
  %s8 = inlined_call_operand.vmem [shape: f32[1,256], index: 8, kind: input, shape index: {}]
  %s9 = inlined_call_operand.vmem [shape: bf16[256,128], index: 9, kind: input, shape index: {}]
  %s10 = inlined_call_operand.vmem [shape: f32[1,128], index: 10, kind: input, shape index: {}]
  %s11 = inlined_call_operand.hbm [shape: bf16[256,128], index: 11, kind: output, shape index: {}]
  %s12 = sld [smem:[#allocation0]]
  $region77: #{tpu_custom_call.1} parent=0
    _
  %s14 = ssub.s32 1, %s12
  %s15 = scalar_select 0, %s14, %s12
  $region1: #{tpu_custom_call.1} parent=0
    #allocation2 [shape = 'u8[65536]{0}', space=vmem, size = 0x10000, scoped, tag = 'output window, operand 0']
    #allocation3 [shape = 's32[2]{0}', space=sflag, size = 0x8, scoped, tag = 'scoped memory for tpu_custom_call.1']
    %16 = vsyncpa [#allocation3], 0
    %s17 = scalar_lea.sflag [#allocation3], 1
    %18 = vsyncpa %s17, 0
    loop: start=0, step=1, limit=4
    $region2: #{tpu_custom_call.1} parent=1 // loop_pre_header
      _
    $region3: #{tpu_custom_call.1} parent=1 // loop_header
      %s20 = sphi 0, %s24
      %p21 = scmp.ge.s32.totalorder %s20, 4
      %s30 = sphi 0, %s32
      %s33 = sphi 0, %s30
      %s34 = sphi 0, %s33
      %s50 = sphi 0, %s34
      %s54 = sphi 0, %s54
      %s56 = sphi 0, %s54
      %s57 = sphi 0, %s56
      %s71 = sphi 0, %s57
      %s75 = sphi 0, %s75
      %s77 = sphi 0, %s75
      %s78 = sphi 0, %s77
      %s92 = sphi 0, %s78
      %s96 = sphi 0, %s96
      %s98 = sphi 0, %s96
      %s99 = sphi 0, %s98
      %s113 = sphi 0, %s99
      %s117 = sphi 0, %s117
      %s119 = sphi 0, %s117
      %s120 = sphi 0, %s119
      %s134 = sphi 0, %s120
      %s138 = sphi 0, %s138
      %s140 = sphi 0, %s138
      %s141 = sphi 0, %s140
      %s155 = sphi 0, %s141
      %s159 = sphi 0, %s159
      %s161 = sphi 0, %s159
      %s162 = sphi 0, %s161
      %s176 = sphi 0, %s162
      %s180 = sphi 0, %s180
      %s182 = sphi 0, %s180
      %s183 = sphi 0, %s182
      %s197 = sphi 0, %s183
      %s201 = sphi 0, %s201
      %s203 = sphi 0, %s201
      %s204 = sphi 0, %s203
      %s218 = sphi 0, %s204
      %s222 = sphi 0, %s222
      %s224 = sphi 0, %s222
      %s225 = sphi 0, %s224
      %s239 = sphi 0, %s225
      %s243 = sphi 0, %s243
      %s245 = sphi 0, %s243
      %s246 = sphi 0, %s245
      %s260 = sphi 0, %s246
      %s266 = sphi 0, %s268
      %s269 = sphi 0, %s266
      %s270 = sphi 0, %s269
      %s286 = sphi 0, %s270
    $region4: #{tpu_custom_call.1} parent=1 // loop_header_branch
      %23 = sbr.rel (%p21) target = $region8
    $region5: #{tpu_custom_call.1} parent=1 // loop_body
      %s25 = ssub.s32 %s20, 1
      %s26 = ssub.s32 %s20, 2
      %s27 = sadd.s32 %s20, 1
      %s28 = ssub.s32 %s20, %s27
      %p29 = scmp.eq.s32.totalorder %s28, 0
      %s31 = sadd.s32 %s30, 1
      %s32 = scalar_select %p29, %s30, %s31
      %p35 = pneg %p29
      %p36 = scmp.eq.s32.totalorder %s20, 1
      %p37 = por %p35, %p36
      %p38 = scmp.ne.s32.totalorder %s30, %s33
      %p39 = scmp.eq.s32.totalorder %s20, 0
      %p40 = por %p38, %p39
      %p41 = scmp.ne.s32.totalorder %s30, %s33
      %p42 = scmp.eq.s32.totalorder %s25, 1
      %p43 = por %p41, %p42
      %p44 = scmp.ne.s32.totalorder %s33, %s34
      %p45 = scmp.eq.s32.totalorder %s25, 0
      %p46 = por %p44, %p45
      %p47 = scmp.ne.s32.totalorder %s33, %s34
      %p48 = scmp.eq.s32.totalorder %s26, 1
      %p49 = por %p47, %p48
      %p51 = scmp.ne.s32.totalorder %s34, %s50
      %p52 = scmp.eq.s32.totalorder %s26, 0
      %p53 = por %p51, %p52
      %s55 = sadd.s32 %s54, 1
      %p58 = scmp.eq.s32.totalorder %s20, 1
      %p59 = scmp.ne.s32.totalorder %s54, %s56
      %p60 = scmp.eq.s32.totalorder %s20, 0
      %p61 = por %p59, %p60
      %p62 = scmp.ne.s32.totalorder %s54, %s56
      %p63 = scmp.eq.s32.totalorder %s25, 1
      %p64 = por %p62, %p63
      %p65 = scmp.ne.s32.totalorder %s56, %s57
      %p66 = scmp.eq.s32.totalorder %s25, 0
      %p67 = por %p65, %p66
      %p68 = scmp.ne.s32.totalorder %s56, %s57
      %p69 = scmp.eq.s32.totalorder %s26, 1
      %p70 = por %p68, %p69
      %p72 = scmp.ne.s32.totalorder %s57, %s71
      %p73 = scmp.eq.s32.totalorder %s26, 0
      %p74 = por %p72, %p73
      %s76 = sadd.s32 %s75, 1
      %p79 = scmp.eq.s32.totalorder %s20, 1
      %p80 = scmp.ne.s32.totalorder %s75, %s77
      %p81 = scmp.eq.s32.totalorder %s20, 0
      %p82 = por %p80, %p81
      %p83 = scmp.ne.s32.totalorder %s75, %s77
      %p84 = scmp.eq.s32.totalorder %s25, 1
      %p85 = por %p83, %p84
      %p86 = scmp.ne.s32.totalorder %s77, %s78
      %p87 = scmp.eq.s32.totalorder %s25, 0
      %p88 = por %p86, %p87
      %p89 = scmp.ne.s32.totalorder %s77, %s78
      %p90 = scmp.eq.s32.totalorder %s26, 1
      %p91 = por %p89, %p90
      %p93 = scmp.ne.s32.totalorder %s78, %s92
      %p94 = scmp.eq.s32.totalorder %s26, 0
      %p95 = por %p93, %p94
      %s97 = sadd.s32 %s96, 1
      %p100 = scmp.eq.s32.totalorder %s20, 1
      %p101 = scmp.ne.s32.totalorder %s96, %s98
      %p102 = scmp.eq.s32.totalorder %s20, 0
      %p103 = por %p101, %p102
      %p104 = scmp.ne.s32.totalorder %s96, %s98
      %p105 = scmp.eq.s32.totalorder %s25, 1
      %p106 = por %p104, %p105
      %p107 = scmp.ne.s32.totalorder %s98, %s99
      %p108 = scmp.eq.s32.totalorder %s25, 0
      %p109 = por %p107, %p108
      %p110 = scmp.ne.s32.totalorder %s98, %s99
      %p111 = scmp.eq.s32.totalorder %s26, 1
      %p112 = por %p110, %p111
      %p114 = scmp.ne.s32.totalorder %s99, %s113
      %p115 = scmp.eq.s32.totalorder %s26, 0
      %p116 = por %p114, %p115
      %s118 = sadd.s32 %s117, 1
      %p121 = scmp.eq.s32.totalorder %s20, 1
      %p122 = scmp.ne.s32.totalorder %s117, %s119
      %p123 = scmp.eq.s32.totalorder %s20, 0
      %p124 = por %p122, %p123
      %p125 = scmp.ne.s32.totalorder %s117, %s119
      %p126 = scmp.eq.s32.totalorder %s25, 1
      %p127 = por %p125, %p126
      %p128 = scmp.ne.s32.totalorder %s119, %s120
      %p129 = scmp.eq.s32.totalorder %s25, 0
      %p130 = por %p128, %p129
      %p131 = scmp.ne.s32.totalorder %s119, %s120
      %p132 = scmp.eq.s32.totalorder %s26, 1
      %p133 = por %p131, %p132
      %p135 = scmp.ne.s32.totalorder %s120, %s134
      %p136 = scmp.eq.s32.totalorder %s26, 0
      %p137 = por %p135, %p136
      %s139 = sadd.s32 %s138, 1
      %p142 = scmp.eq.s32.totalorder %s20, 1
      %p143 = scmp.ne.s32.totalorder %s138, %s140
      %p144 = scmp.eq.s32.totalorder %s20, 0
      %p145 = por %p143, %p144
      %p146 = scmp.ne.s32.totalorder %s138, %s140
      %p147 = scmp.eq.s32.totalorder %s25, 1
      %p148 = por %p146, %p147
      %p149 = scmp.ne.s32.totalorder %s140, %s141
      %p150 = scmp.eq.s32.totalorder %s25, 0
      %p151 = por %p149, %p150
      %p152 = scmp.ne.s32.totalorder %s140, %s141
      %p153 = scmp.eq.s32.totalorder %s26, 1
      %p154 = por %p152, %p153
      %p156 = scmp.ne.s32.totalorder %s141, %s155
      %p157 = scmp.eq.s32.totalorder %s26, 0
      %p158 = por %p156, %p157
      %s160 = sadd.s32 %s159, 1
      %p163 = scmp.eq.s32.totalorder %s20, 1
      %p164 = scmp.ne.s32.totalorder %s159, %s161
      %p165 = scmp.eq.s32.totalorder %s20, 0
      %p166 = por %p164, %p165
      %p167 = scmp.ne.s32.totalorder %s159, %s161
      %p168 = scmp.eq.s32.totalorder %s25, 1
      %p169 = por %p167, %p168
      %p170 = scmp.ne.s32.totalorder %s161, %s162
      %p171 = scmp.eq.s32.totalorder %s25, 0
      %p172 = por %p170, %p171
      %p173 = scmp.ne.s32.totalorder %s161, %s162
      %p174 = scmp.eq.s32.totalorder %s26, 1
      %p175 = por %p173, %p174
      %p177 = scmp.ne.s32.totalorder %s162, %s176
      %p178 = scmp.eq.s32.totalorder %s26, 0
      %p179 = por %p177, %p178
      %s181 = sadd.s32 %s180, 1
      %p184 = scmp.eq.s32.totalorder %s20, 1
      %p185 = scmp.ne.s32.totalorder %s180, %s182
      %p186 = scmp.eq.s32.totalorder %s20, 0
      %p187 = por %p185, %p186
      %p188 = scmp.ne.s32.totalorder %s180, %s182
      %p189 = scmp.eq.s32.totalorder %s25, 1
      %p190 = por %p188, %p189
      %p191 = scmp.ne.s32.totalorder %s182, %s183
      %p192 = scmp.eq.s32.totalorder %s25, 0
      %p193 = por %p191, %p192
      %p194 = scmp.ne.s32.totalorder %s182, %s183
      %p195 = scmp.eq.s32.totalorder %s26, 1
      %p196 = por %p194, %p195
      %p198 = scmp.ne.s32.totalorder %s183, %s197
      %p199 = scmp.eq.s32.totalorder %s26, 0
      %p200 = por %p198, %p199
      %s202 = sadd.s32 %s201, 1
      %p205 = scmp.eq.s32.totalorder %s20, 1
      %p206 = scmp.ne.s32.totalorder %s201, %s203
      %p207 = scmp.eq.s32.totalorder %s20, 0
      %p208 = por %p206, %p207
      %p209 = scmp.ne.s32.totalorder %s201, %s203
      %p210 = scmp.eq.s32.totalorder %s25, 1
      %p211 = por %p209, %p210
      %p212 = scmp.ne.s32.totalorder %s203, %s204
      %p213 = scmp.eq.s32.totalorder %s25, 0
      %p214 = por %p212, %p213
      %p215 = scmp.ne.s32.totalorder %s203, %s204
      %p216 = scmp.eq.s32.totalorder %s26, 1
      %p217 = por %p215, %p216
      %p219 = scmp.ne.s32.totalorder %s204, %s218
      %p220 = scmp.eq.s32.totalorder %s26, 0
      %p221 = por %p219, %p220
      %s223 = sadd.s32 %s222, 1
      %p226 = scmp.eq.s32.totalorder %s20, 1
      %p227 = scmp.ne.s32.totalorder %s222, %s224
      %p228 = scmp.eq.s32.totalorder %s20, 0
      %p229 = por %p227, %p228
      %p230 = scmp.ne.s32.totalorder %s222, %s224
      %p231 = scmp.eq.s32.totalorder %s25, 1
      %p232 = por %p230, %p231
      %p233 = scmp.ne.s32.totalorder %s224, %s225
      %p234 = scmp.eq.s32.totalorder %s25, 0
      %p235 = por %p233, %p234
      %p236 = scmp.ne.s32.totalorder %s224, %s225
      %p237 = scmp.eq.s32.totalorder %s26, 1
      %p238 = por %p236, %p237
      %p240 = scmp.ne.s32.totalorder %s225, %s239
      %p241 = scmp.eq.s32.totalorder %s26, 0
      %p242 = por %p240, %p241
      %s244 = sadd.s32 %s243, 1
      %p247 = scmp.eq.s32.totalorder %s20, 1
      %p248 = scmp.ne.s32.totalorder %s243, %s245
      %p249 = scmp.eq.s32.totalorder %s20, 0
      %p250 = por %p248, %p249
      %p251 = scmp.ne.s32.totalorder %s243, %s245
      %p252 = scmp.eq.s32.totalorder %s25, 1
      %p253 = por %p251, %p252
      %p254 = scmp.ne.s32.totalorder %s245, %s246
      %p255 = scmp.eq.s32.totalorder %s25, 0
      %p256 = por %p254, %p255
      %p257 = scmp.ne.s32.totalorder %s245, %s246
      %p258 = scmp.eq.s32.totalorder %s26, 1
      %p259 = por %p257, %p258
      %p261 = scmp.ne.s32.totalorder %s246, %s260
      %p262 = scmp.eq.s32.totalorder %s26, 0
      %p263 = por %p261, %p262
      %s264 = ssub.s32 %s20, %s27
      %p265 = scmp.eq.s32.totalorder %s264, 0
      %s267 = sadd.s32 %s266, 1
      %s268 = scalar_select %p265, %s266, %s267
      %p271 = pneg %p265
      %p272 = scmp.eq.s32.totalorder %s20, 1
      %p273 = por %p271, %p272
      %p274 = scmp.ne.s32.totalorder %s266, %s269
      %p275 = scmp.eq.s32.totalorder %s20, 0
      %p276 = por %p274, %p275
      %p277 = scmp.ne.s32.totalorder %s266, %s269
      %p278 = scmp.eq.s32.totalorder %s25, 1
      %p279 = por %p277, %p278
      %p280 = scmp.ne.s32.totalorder %s269, %s270
      %p281 = scmp.eq.s32.totalorder %s25, 0
      %p282 = por %p280, %p281
      %p283 = scmp.ne.s32.totalorder %s269, %s270
      %p284 = scmp.eq.s32.totalorder %s26, 1
      %p285 = por %p283, %p284
      %p287 = scmp.ne.s32.totalorder %s270, %s286
      %p288 = scmp.eq.s32.totalorder %s26, 0
      %p289 = por %p287, %p288
      %p290 = scmp.le.s32.totalorder 1, %s20
      %p291 = scmp.lt.s32.totalorder %s20, 3
      %p292 = pnand %p290, %p291
      %p293 = pneg %p292
      // Predicated region
      $region9: #{tpu_custom_call.1} parent=5 // pred_check
        _
      $region10: #{tpu_custom_call.1} parent=5 // pred_check_branch
        %295 = sbr.rel (%p292) target = $region12
      $region11: #{tpu_custom_call.1} parent=5 // pred_region
        %s296 = ssub.s32 %s20, 1
        // Predicated region
        $region13: #{tpu_custom_call.1} parent=11 // pred_check
          %p297 = pneg %p67
        $region14: #{tpu_custom_call.1} parent=11 // pred_check_branch
          %299 = sbr.rel (%p297) target = $region16
        $region15: #{tpu_custom_call.1} parent=11 // pred_region
          _
        $region16: #{tpu_custom_call.1} parent=11 // pred_fallthru
          _
        // Predicated region
        $region17: #{tpu_custom_call.1} parent=11 // pred_check
          %p300 = pneg %p88
        $region18: #{tpu_custom_call.1} parent=11 // pred_check_branch
          %302 = sbr.rel (%p300) target = $region20
        $region19: #{tpu_custom_call.1} parent=11 // pred_region
          _
        $region20: #{tpu_custom_call.1} parent=11 // pred_fallthru
          _
        // Predicated region
        $region21: #{tpu_custom_call.1} parent=11 // pred_check
          %p303 = pneg %p109
        $region22: #{tpu_custom_call.1} parent=11 // pred_check_branch
          %305 = sbr.rel (%p303) target = $region24
        $region23: #{tpu_custom_call.1} parent=11 // pred_region
          _
        $region24: #{tpu_custom_call.1} parent=11 // pred_fallthru
          _
        // Predicated region
        $region25: #{tpu_custom_call.1} parent=11 // pred_check
          %p306 = pneg %p130
        $region26: #{tpu_custom_call.1} parent=11 // pred_check_branch
          %308 = sbr.rel (%p306) target = $region28
        $region27: #{tpu_custom_call.1} parent=11 // pred_region
          _
        $region28: #{tpu_custom_call.1} parent=11 // pred_fallthru
          _
        // Predicated region
        $region29: #{tpu_custom_call.1} parent=11 // pred_check
          %p309 = pneg %p151
        $region30: #{tpu_custom_call.1} parent=11 // pred_check_branch
          %311 = sbr.rel (%p309) target = $region32
        $region31: #{tpu_custom_call.1} parent=11 // pred_region
          _
        $region32: #{tpu_custom_call.1} parent=11 // pred_fallthru
          _
        // Predicated region
        $region33: #{tpu_custom_call.1} parent=11 // pred_check
          %p312 = pneg %p172
        $region34: #{tpu_custom_call.1} parent=11 // pred_check_branch
          %314 = sbr.rel (%p312) target = $region36
        $region35: #{tpu_custom_call.1} parent=11 // pred_region
          _
        $region36: #{tpu_custom_call.1} parent=11 // pred_fallthru
          _
        // Predicated region
        $region37: #{tpu_custom_call.1} parent=11 // pred_check
          %p315 = pneg %p193
        $region38: #{tpu_custom_call.1} parent=11 // pred_check_branch
          %317 = sbr.rel (%p315) target = $region40
        $region39: #{tpu_custom_call.1} parent=11 // pred_region
          _
        $region40: #{tpu_custom_call.1} parent=11 // pred_fallthru
          _
        // Predicated region
        $region41: #{tpu_custom_call.1} parent=11 // pred_check
          %p318 = pneg %p214
        $region42: #{tpu_custom_call.1} parent=11 // pred_check_branch
          %320 = sbr.rel (%p318) target = $region44
        $region43: #{tpu_custom_call.1} parent=11 // pred_region
          _
        $region44: #{tpu_custom_call.1} parent=11 // pred_fallthru
          _
        // Predicated region
        $region45: #{tpu_custom_call.1} parent=11 // pred_check
          %p321 = pneg %p235
        $region46: #{tpu_custom_call.1} parent=11 // pred_check_branch
          %323 = sbr.rel (%p321) target = $region48
        $region47: #{tpu_custom_call.1} parent=11 // pred_region
          _
        $region48: #{tpu_custom_call.1} parent=11 // pred_fallthru
          _
        // Predicated region
        $region49: #{tpu_custom_call.1} parent=11 // pred_check
          %p324 = pneg %p256
        $region50: #{tpu_custom_call.1} parent=11 // pred_check_branch
          %326 = sbr.rel (%p324) target = $region52
        $region51: #{tpu_custom_call.1} parent=11 // pred_region
          _
        $region52: #{tpu_custom_call.1} parent=11 // pred_fallthru
          _
      $region12: #{tpu_custom_call.1} parent=5 // pred_fallthru
        _
      %p327 = scmp.lt.s32.totalorder %s20, 2
      // Predicated region
      $region53: #{tpu_custom_call.1} parent=5 // pred_check
        %p328 = pneg %p327
      $region54: #{tpu_custom_call.1} parent=5 // pred_check_branch
        %330 = sbr.rel (%p328) target = $region56
      $region55: #{tpu_custom_call.1} parent=5 // pred_region
        // Predicated region
        $region57: #{tpu_custom_call.1} parent=55 // pred_check
          %p331 = pneg %p40
        $region58: #{tpu_custom_call.1} parent=55 // pred_check_branch
          %333 = sbr.rel (%p331) target = $region60
        $region59: #{tpu_custom_call.1} parent=55 // pred_region
          %s334 = smul.u32 16, %s20
          %p335 = scmp.lt.s32.totalorder %s334, 31
          %s336 = scalar_select %p335, %s334, 31
          %s337 = smul.addr %s336, 7
          %s338 = smul.addr %s337, 8
          %s339 = scalar_lea.vmem %s0, %s338
          %s340 = smul.u32 16, %s20
        $region60: #{tpu_custom_call.1} parent=55 // pred_fallthru
          _
      $region56: #{tpu_custom_call.1} parent=5 // pred_fallthru
        _
      %p341 = scmp.le.s32.totalorder 1, %s20
      %p342 = scmp.lt.s32.totalorder %s20, 3
      %p343 = pnand %p341, %p342
      %p344 = pneg %p343
      // Predicated region
      $region61: #{tpu_custom_call.1} parent=5 // pred_check
        _
      $region62: #{tpu_custom_call.1} parent=5 // pred_check_branch
        %346 = sbr.rel (%p343) target = $region64
      $region63: #{tpu_custom_call.1} parent=5 // pred_region
        %s347 = ssub.s32 %s20, 1
        %s348 = smul.u32 16, %s25
        %p349 = scmp.lt.s32.totalorder %s348, 31
        %s350 = scalar_select %p349, %s348, 31
        %s351 = smul.addr %s350, 7
        %s352 = smul.addr %s351, 8
        %s353 = scalar_lea.vmem %s0, %s352
        %p354 = pneg %p46
        %p355 = pneg %p43
        %p356 = pneg %p67
        %p357 = pneg %p64
        %p358 = pneg %p88
        %p359 = pneg %p85
        %p360 = pneg %p109
        %p361 = pneg %p106
        %p362 = pneg %p130
        %p363 = pneg %p127
        %p364 = pneg %p151
        %p365 = pneg %p148
        %p366 = pneg %p172
        %p367 = pneg %p169
        %p368 = pneg %p193
        %p369 = pneg %p190
        %p370 = pneg %p214
        %p371 = pneg %p211
        %p372 = pneg %p235
        %p373 = pneg %p232
        %p374 = pneg %p256
        %p375 = pneg %p253
        %p376 = pneg %p282
        %p377 = pneg %p279
        %s378 = sand.u32 %s269, 1
        %s379 = scalar_lea.sflag [#allocation3], %s378
        %s380 = sand.u32 %s269, 1
        %s381 = smul.addr %s380, 64
        %s382 = scalar_lea.vmem [#allocation2], %s381
        %s383 = smul.u32 16, %s25
        %p384 = scmp.lt.s32.totalorder %s383, 31
        %s385 = scalar_select %p384, %s383, 31
        %s386 = smul.addr %s385, 7
        %s387 = smul.addr %s386, 8
        %s388 = scalar_lea.vmem %s0, %s387
        %s389 = smul.u32 16, %s25
        %s390 = smul.u32 16, %s25
        %v392 = vld [vmem:[%s388] sm:$0xff]
        %v393 = vld [vmem:[%s388 + $0x8] sm:$0xff]
        %v394 = vld [vmem:[%s388 + $0x10] sm:$0xff]
        %v395 = vld [vmem:[%s388 + $0x18] sm:$0xff]
        %v396 = vld [vmem:[%s388 + $0x20] sm:$0xff]
        %v397 = vld [vmem:[%s388 + $0x28] sm:$0xff]
        %v398 = vld [vmem:[%s388 + $0x30] sm:$0xff]
        %v399 = vld [vmem:[%s388 + $0x38] sm:$0xff]
        %v400 = vld [vmem:[%s388 + $0x40] sm:$0xff]
        %v401 = vld [vmem:[%s388 + $0x48] sm:$0xff]
        %v402 = vld [vmem:[%s388 + $0x50] sm:$0xff]
        %v403 = vld [vmem:[%s388 + $0x58] sm:$0xff]
        %v404 = vld [vmem:[%s388 + $0x60] sm:$0xff]
        %v405 = vld [vmem:[%s388 + $0x68] sm:$0xff]
        %v406 = vld [vmem:[%s388 + $0x70] sm:$0xff]
        %v407 = vld [vmem:[%s388 + $0x78] sm:$0xff]
        %v408 = vld [vmem:[%s388 + $0x80] sm:$0xff]
        %v409 = vld [vmem:[%s388 + $0x88] sm:$0xff]
        %v410 = vld [vmem:[%s388 + $0x90] sm:$0xff]
        %v411 = vld [vmem:[%s388 + $0x98] sm:$0xff]
        %v412 = vld [vmem:[%s388 + $0xa0] sm:$0xff]
        %v413 = vld [vmem:[%s388 + $0xa8] sm:$0xff]
        %v414 = vld [vmem:[%s388 + $0xb0] sm:$0xff]
        %v415 = vld [vmem:[%s388 + $0xb8] sm:$0xff]
        %v416 = vld [vmem:[%s388 + $0xc0] sm:$0xff]
        %v417 = vld [vmem:[%s388 + $0xc8] sm:$0xff]
        %v418 = vld [vmem:[%s388 + $0xd0] sm:$0xff]
        %v419 = vld [vmem:[%s388 + $0xd8] sm:$0xff]
        %v420 = vld [vmem:[%s388 + $0xe0] sm:$0xff]
        %v421 = vld [vmem:[%s388 + $0xe8] sm:$0xff]
        %v422 = vld [vmem:[%s388 + $0xf0] sm:$0xff]
        %v423 = vld [vmem:[%s388 + $0xf8] sm:$0xff]
        %v424 = vld [vmem:[%s388 + $0x100] sm:$0xff]
        %v425 = vld [vmem:[%s388 + $0x108] sm:$0xff]
        %v426 = vld [vmem:[%s388 + $0x110] sm:$0xff]
        %v427 = vld [vmem:[%s388 + $0x118] sm:$0xff]
        %v428 = vld [vmem:[%s388 + $0x120] sm:$0xff]
        %v429 = vld [vmem:[%s388 + $0x128] sm:$0xff]
        %v430 = vld [vmem:[%s388 + $0x130] sm:$0xff]
        %v431 = vld [vmem:[%s388 + $0x138] sm:$0xff]
        %v432 = vld [vmem:[%s388 + $0x140] sm:$0xff]
        %v433 = vld [vmem:[%s388 + $0x148] sm:$0xff]
        %v434 = vld [vmem:[%s388 + $0x150] sm:$0xff]
        %v435 = vld [vmem:[%s388 + $0x158] sm:$0xff]
        %v436 = vld [vmem:[%s388 + $0x160] sm:$0xff]
        %v437 = vld [vmem:[%s388 + $0x168] sm:$0xff]
        %v438 = vld [vmem:[%s388 + $0x170] sm:$0xff]
        %v439 = vld [vmem:[%s388 + $0x178] sm:$0xff]
        %v440 = vld [vmem:[%s388 + $0x180] sm:$0xff]
        %v441 = vld [vmem:[%s388 + $0x188] sm:$0xff]
        %v442 = vld [vmem:[%s388 + $0x190] sm:$0xff]
        %v443 = vld [vmem:[%s388 + $0x198] sm:$0xff]
        %v444 = vld [vmem:[%s388 + $0x1a0] sm:$0xff]
        %v445 = vld [vmem:[%s388 + $0x1a8] sm:$0xff]
        %v446 = vld [vmem:[%s388 + $0x1b0] sm:$0xff]
        %v447 = vld [vmem:[%s388 + $0x1b8] sm:$0xff]
        %v448 = vld [vmem:[%s388 + $0x1c0] sm:$0xff]
        %v449 = vld [vmem:[%s388 + $0x1c8] sm:$0xff]
        %v450 = vld [vmem:[%s388 + $0x1d0] sm:$0xff]
        %v451 = vld [vmem:[%s388 + $0x1d8] sm:$0xff]
        %v452 = vld [vmem:[%s388 + $0x1e0] sm:$0xff]
        %v453 = vld [vmem:[%s388 + $0x1e8] sm:$0xff]
        %v454 = vld [vmem:[%s388 + $0x1f0] sm:$0xff]
        %v455 = vld [vmem:[%s388 + $0x1f8] sm:$0xff]
        %v456 = vld [vmem:[%s388 + $0x200] sm:$0xff]
        %v457 = vld [vmem:[%s388 + $0x208] sm:$0xff]
        %v458 = vld [vmem:[%s388 + $0x210] sm:$0xff]
        %v459 = vld [vmem:[%s388 + $0x218] sm:$0xff]
        %v460 = vld [vmem:[%s388 + $0x220] sm:$0xff]
        %v461 = vld [vmem:[%s388 + $0x228] sm:$0xff]
        %v462 = vld [vmem:[%s388 + $0x230] sm:$0xff]
        %v463 = vld [vmem:[%s388 + $0x238] sm:$0xff]
        %v464 = vld [vmem:[%s388 + $0x240] sm:$0xff]
        %v465 = vld [vmem:[%s388 + $0x248] sm:$0xff]
        %v466 = vld [vmem:[%s388 + $0x250] sm:$0xff]
        %v467 = vld [vmem:[%s388 + $0x258] sm:$0xff]
        %v468 = vld [vmem:[%s388 + $0x260] sm:$0xff]
        %v469 = vld [vmem:[%s388 + $0x268] sm:$0xff]
        %v470 = vld [vmem:[%s388 + $0x270] sm:$0xff]
        %v471 = vld [vmem:[%s388 + $0x278] sm:$0xff]
        %v472 = vld [vmem:[%s388 + $0x280] sm:$0xff]
        %v473 = vld [vmem:[%s388 + $0x288] sm:$0xff]
        %v474 = vld [vmem:[%s388 + $0x290] sm:$0xff]
        %v475 = vld [vmem:[%s388 + $0x298] sm:$0xff]
        %v476 = vld [vmem:[%s388 + $0x2a0] sm:$0xff]
        %v477 = vld [vmem:[%s388 + $0x2a8] sm:$0xff]
        %v478 = vld [vmem:[%s388 + $0x2b0] sm:$0xff]
        %v479 = vld [vmem:[%s388 + $0x2b8] sm:$0xff]
        %v480 = vld [vmem:[%s388 + $0x2c0] sm:$0xff]
        %v481 = vld [vmem:[%s388 + $0x2c8] sm:$0xff]
        %v482 = vld [vmem:[%s388 + $0x2d0] sm:$0xff]
        %v483 = vld [vmem:[%s388 + $0x2d8] sm:$0xff]
        %v484 = vld [vmem:[%s388 + $0x2e0] sm:$0xff]
        %v485 = vld [vmem:[%s388 + $0x2e8] sm:$0xff]
        %v486 = vld [vmem:[%s388 + $0x2f0] sm:$0xff]
        %v487 = vld [vmem:[%s388 + $0x2f8] sm:$0xff]
        %v488 = vld [vmem:[%s388 + $0x300] sm:$0xff]
        %v489 = vld [vmem:[%s388 + $0x308] sm:$0xff]
        %v490 = vld [vmem:[%s388 + $0x310] sm:$0xff]
        %v491 = vld [vmem:[%s388 + $0x318] sm:$0xff]
        %v492 = vld [vmem:[%s388 + $0x320] sm:$0xff]
        %v493 = vld [vmem:[%s388 + $0x328] sm:$0xff]
        %v494 = vld [vmem:[%s388 + $0x330] sm:$0xff]
        %v495 = vld [vmem:[%s388 + $0x338] sm:$0xff]
        %v496 = vld [vmem:[%s388 + $0x340] sm:$0xff]
        %v497 = vld [vmem:[%s388 + $0x348] sm:$0xff]
        %v498 = vld [vmem:[%s388 + $0x350] sm:$0xff]
        %v499 = vld [vmem:[%s388 + $0x358] sm:$0xff]
        %v500 = vld [vmem:[%s388 + $0x360] sm:$0xff]
        %v501 = vld [vmem:[%s388 + $0x368] sm:$0xff]
        %v502 = vld [vmem:[%s388 + $0x370] sm:$0xff]
        %v503 = vld [vmem:[%s388 + $0x378] sm:$0xff]
        %v504 = vpack.c.bf16 %v399, %v392
        %v505 = vpack.c.bf16 %v400, %v393
        %v506 = vpack.c.bf16 %v401, %v394
        %v507 = vpack.c.bf16 %v402, %v395
        %v508 = vpack.c.bf16 %v403, %v396
        %v509 = vpack.c.bf16 %v404, %v397
        %v510 = vpack.c.bf16 %v405, %v398
        %v511 = vpack.c.bf16 %v413, %v406
        %v512 = vpack.c.bf16 %v414, %v407
        %v513 = vpack.c.bf16 %v415, %v408
        %v514 = vpack.c.bf16 %v416, %v409
        %v515 = vpack.c.bf16 %v417, %v410
        %v516 = vpack.c.bf16 %v418, %v411
        %v517 = vpack.c.bf16 %v419, %v412
        %v518 = vpack.c.bf16 %v427, %v420
        %v519 = vpack.c.bf16 %v428, %v421
        %v520 = vpack.c.bf16 %v429, %v422
        %v521 = vpack.c.bf16 %v430, %v423
        %v522 = vpack.c.bf16 %v431, %v424
        %v523 = vpack.c.bf16 %v432, %v425
        %v524 = vpack.c.bf16 %v433, %v426
        %v525 = vpack.c.bf16 %v441, %v434
        %v526 = vpack.c.bf16 %v442, %v435
        %v527 = vpack.c.bf16 %v443, %v436
        %v528 = vpack.c.bf16 %v444, %v437
        %v529 = vpack.c.bf16 %v445, %v438
        %v530 = vpack.c.bf16 %v446, %v439
        %v531 = vpack.c.bf16 %v447, %v440
        %v532 = vpack.c.bf16 %v455, %v448
        %v533 = vpack.c.bf16 %v456, %v449
        %v534 = vpack.c.bf16 %v457, %v450
        %v535 = vpack.c.bf16 %v458, %v451
        %v536 = vpack.c.bf16 %v459, %v452
        %v537 = vpack.c.bf16 %v460, %v453
        %v538 = vpack.c.bf16 %v461, %v454
        %v539 = vpack.c.bf16 %v469, %v462
        %v540 = vpack.c.bf16 %v470, %v463
        %v541 = vpack.c.bf16 %v471, %v464
        %v542 = vpack.c.bf16 %v472, %v465
        %v543 = vpack.c.bf16 %v473, %v466
        %v544 = vpack.c.bf16 %v474, %v467
        %v545 = vpack.c.bf16 %v475, %v468
        %v546 = vpack.c.bf16 %v483, %v476
        %v547 = vpack.c.bf16 %v484, %v477
        %v548 = vpack.c.bf16 %v485, %v478
        %v549 = vpack.c.bf16 %v486, %v479
        %v550 = vpack.c.bf16 %v487, %v480
        %v551 = vpack.c.bf16 %v488, %v481
        %v552 = vpack.c.bf16 %v489, %v482
        %v553 = vpack.c.bf16 %v497, %v490
        %v554 = vpack.c.bf16 %v498, %v491
        %v555 = vpack.c.bf16 %v499, %v492
        %v556 = vpack.c.bf16 %v500, %v493
        %v557 = vpack.c.bf16 %v501, %v494
        %v558 = vpack.c.bf16 %v502, %v495
        %v559 = vpack.c.bf16 %v503, %v496
        %v560 = vld [vmem:[%s1] sm:$0xf]
        %v561 = vld [vmem:[%s1 + $0x4] sm:$0xf]
        %v562 = vld [vmem:[%s1 + $0x8] sm:$0xf]
        %v563 = vld [vmem:[%s1 + $0xc] sm:$0xf]
        %v564 = vld [vmem:[%s1 + $0x10] sm:$0xf]
        %v565 = vld [vmem:[%s1 + $0x14] sm:$0xf]
        %v566 = vld [vmem:[%s1 + $0x18] sm:$0xf]
        %v567 = vld [vmem:[%s1 + $0x1c] sm:$0xf]
        %v568 = vld [vmem:[%s1 + $0x20] sm:$0xf]
        %v569 = vld [vmem:[%s1 + $0x24] sm:$0xf]
        %v570 = vld [vmem:[%s1 + $0x28] sm:$0xf]
        %v571 = vld [vmem:[%s1 + $0x2c] sm:$0xf]
        %v572 = vld [vmem:[%s1 + $0x30] sm:$0xf]
        %v573 = vld [vmem:[%s1 + $0x34] sm:$0xf]
        %v574 = vld [vmem:[%s1 + $0x38] sm:$0xf]
        %v575 = vld [vmem:[%s1 + $0x3c] sm:$0xf]
        %v576 = vld [vmem:[%s1 + $0x40] sm:$0xf]
        %v577 = vld [vmem:[%s1 + $0x44] sm:$0xf]
        %v578 = vld [vmem:[%s1 + $0x48] sm:$0xf]
        %v579 = vld [vmem:[%s1 + $0x4c] sm:$0xf]
        %v580 = vld [vmem:[%s1 + $0x50] sm:$0xf]
        %v581 = vld [vmem:[%s1 + $0x54] sm:$0xf]
        %v582 = vld [vmem:[%s1 + $0x58] sm:$0xf]
        %v583 = vld [vmem:[%s1 + $0x5c] sm:$0xf]
        %v584 = vld [vmem:[%s1 + $0x60] sm:$0xf]
        %v585 = vld [vmem:[%s1 + $0x64] sm:$0xf]
        %v586 = vld [vmem:[%s1 + $0x68] sm:$0xf]
        %v587 = vld [vmem:[%s1 + $0x6c] sm:$0xf]
        %v588 = vld [vmem:[%s1 + $0x70] sm:$0xf]
        %v589 = vld [vmem:[%s1 + $0x74] sm:$0xf]
        %v590 = vld [vmem:[%s1 + $0x78] sm:$0xf]
        %v591 = vld [vmem:[%s1 + $0x7c] sm:$0xf]
        %v592 = vld [vmem:[%s1 + $0x80] sm:$0xf]
        %v593 = vld [vmem:[%s1 + $0x84] sm:$0xf]
        %v594 = vld [vmem:[%s1 + $0x88] sm:$0xf]
        %v595 = vld [vmem:[%s1 + $0x8c] sm:$0xf]
        %v596 = vld [vmem:[%s1 + $0x90] sm:$0xf]
        %v597 = vld [vmem:[%s1 + $0x94] sm:$0xf]
        %v598 = vld [vmem:[%s1 + $0x98] sm:$0xf]
        %v599 = vld [vmem:[%s1 + $0x9c] sm:$0xf]
        %v600 = vld [vmem:[%s1 + $0xa0] sm:$0xf]
        %v601 = vld [vmem:[%s1 + $0xa4] sm:$0xf]
        %v602 = vld [vmem:[%s1 + $0xa8] sm:$0xf]
        %v603 = vld [vmem:[%s1 + $0xac] sm:$0xf]
        %v604 = vld [vmem:[%s1 + $0xb0] sm:$0xf]
        %v605 = vld [vmem:[%s1 + $0xb4] sm:$0xf]
        %v606 = vld [vmem:[%s1 + $0xb8] sm:$0xf]
        %v607 = vld [vmem:[%s1 + $0xbc] sm:$0xf]
        %v608 = vld [vmem:[%s1 + $0xc0] sm:$0xf]
        %v609 = vld [vmem:[%s1 + $0xc4] sm:$0xf]
        %v610 = vld [vmem:[%s1 + $0xc8] sm:$0xf]
        %v611 = vld [vmem:[%s1 + $0xcc] sm:$0xf]
        %v612 = vld [vmem:[%s1 + $0xd0] sm:$0xf]
        %v613 = vld [vmem:[%s1 + $0xd4] sm:$0xf]
        %v614 = vld [vmem:[%s1 + $0xd8] sm:$0xf]
        %v615 = vld [vmem:[%s1 + $0xdc] sm:$0xf]
        %v616 = vld [vmem:[%s1 + $0xe0] sm:$0xf]
        %v617 = vld [vmem:[%s1 + $0xe4] sm:$0xf]
        %v618 = vld [vmem:[%s1 + $0xe8] sm:$0xf]
        %v619 = vld [vmem:[%s1 + $0xec] sm:$0xf]
        %v620 = vld [vmem:[%s1 + $0xf0] sm:$0xf]
        %v621 = vld [vmem:[%s1 + $0xf4] sm:$0xf]
        %v622 = vld [vmem:[%s1 + $0xf8] sm:$0xf]
        %v623 = vld [vmem:[%s1 + $0xfc] sm:$0xf]
        %v624 = vld [vmem:[%s1 + $0x100] sm:$0xf]
        %v625 = vld [vmem:[%s1 + $0x104] sm:$0xf]
        %v626 = vld [vmem:[%s1 + $0x108] sm:$0xf]
        %v627 = vld [vmem:[%s1 + $0x10c] sm:$0xf]
        %v628 = vld [vmem:[%s1 + $0x110] sm:$0xf]
        %v629 = vld [vmem:[%s1 + $0x114] sm:$0xf]
        %v630 = vld [vmem:[%s1 + $0x118] sm:$0xf]
        %v631 = vld [vmem:[%s1 + $0x11c] sm:$0xf]
        %v632 = vld [vmem:[%s1 + $0x120] sm:$0xf]
        %v633 = vld [vmem:[%s1 + $0x124] sm:$0xf]
        %v634 = vld [vmem:[%s1 + $0x128] sm:$0xf]
        %v635 = vld [vmem:[%s1 + $0x12c] sm:$0xf]
        %v636 = vld [vmem:[%s1 + $0x130] sm:$0xf]
        %v637 = vld [vmem:[%s1 + $0x134] sm:$0xf]
        %v638 = vld [vmem:[%s1 + $0x138] sm:$0xf]
        %v639 = vld [vmem:[%s1 + $0x13c] sm:$0xf]
        %v640 = vld [vmem:[%s1 + $0x140] sm:$0xf]
        %v641 = vld [vmem:[%s1 + $0x144] sm:$0xf]
        %v642 = vld [vmem:[%s1 + $0x148] sm:$0xf]
        %v643 = vld [vmem:[%s1 + $0x14c] sm:$0xf]
        %v644 = vld [vmem:[%s1 + $0x150] sm:$0xf]
        %v645 = vld [vmem:[%s1 + $0x154] sm:$0xf]
        %v646 = vld [vmem:[%s1 + $0x158] sm:$0xf]
        %v647 = vld [vmem:[%s1 + $0x15c] sm:$0xf]
        %v648 = vld [vmem:[%s1 + $0x160] sm:$0xf]
        %v649 = vld [vmem:[%s1 + $0x164] sm:$0xf]
        %v650 = vld [vmem:[%s1 + $0x168] sm:$0xf]
        %v651 = vld [vmem:[%s1 + $0x16c] sm:$0xf]
        %v652 = vld [vmem:[%s1 + $0x170] sm:$0xf]
        %v653 = vld [vmem:[%s1 + $0x174] sm:$0xf]
        %v654 = vld [vmem:[%s1 + $0x178] sm:$0xf]
        %v655 = vld [vmem:[%s1 + $0x17c] sm:$0xf]
        %v656 = vld [vmem:[%s1 + $0x180] sm:$0xf]
        %v657 = vld [vmem:[%s1 + $0x184] sm:$0xf]
        %v658 = vld [vmem:[%s2] sm:$0x1]
        %v660 = vperm.slane %v658, 0
        %v760 = vunpack.c.l.b16 %v560
        %v761 = vunpack.c.l.b16 %v561
        %v762 = vunpack.c.l.b16 %v562
        %v763 = vunpack.c.l.b16 %v563
        %v764 = vunpack.c.l.b16 %v564
        %v765 = vunpack.c.l.b16 %v565
        %v766 = vunpack.c.l.b16 %v566
        %v767 = vunpack.c.l.b16 %v567
        %v768 = vunpack.c.l.b16 %v568
        %v769 = vunpack.c.l.b16 %v569
        %v770 = vunpack.c.l.b16 %v570
        %v771 = vunpack.c.l.b16 %v571
        %v772 = vunpack.c.l.b16 %v572
        %v773 = vunpack.c.l.b16 %v573
        %v774 = vunpack.c.l.b16 %v574
        %v775 = vunpack.c.l.b16 %v575
        %v776 = vunpack.c.l.b16 %v576
        %v777 = vunpack.c.l.b16 %v577
        %v778 = vunpack.c.l.b16 %v578
        %v779 = vunpack.c.l.b16 %v579
        %v780 = vunpack.c.l.b16 %v580
        %v781 = vunpack.c.l.b16 %v581
        %v782 = vunpack.c.l.b16 %v582
        %v783 = vunpack.c.l.b16 %v583
        %v784 = vunpack.c.l.b16 %v584
        %v785 = vunpack.c.l.b16 %v585
        %v786 = vunpack.c.l.b16 %v586
        %v787 = vunpack.c.l.b16 %v587
        %v788 = vunpack.c.l.b16 %v588
        %v789 = vunpack.c.l.b16 %v589
        %v790 = vunpack.c.l.b16 %v590
        %v791 = vunpack.c.l.b16 %v591
        %v792 = vunpack.c.l.b16 %v592
        %v793 = vunpack.c.l.b16 %v593
        %v794 = vunpack.c.l.b16 %v594
        %v795 = vunpack.c.l.b16 %v595
        %v796 = vunpack.c.l.b16 %v596
        %v797 = vunpack.c.l.b16 %v597
        %v798 = vunpack.c.l.b16 %v598
        %v799 = vunpack.c.l.b16 %v599
        %v800 = vunpack.c.l.b16 %v600
        %v801 = vunpack.c.l.b16 %v601
        %v802 = vunpack.c.l.b16 %v602
        %v803 = vunpack.c.l.b16 %v603
        %v804 = vunpack.c.l.b16 %v604
        %v805 = vunpack.c.l.b16 %v605
        %v806 = vunpack.c.l.b16 %v606
        %v807 = vunpack.c.l.b16 %v607
        %v808 = vunpack.c.l.b16 %v608
        %v809 = vunpack.c.l.b16 %v609
        %v810 = vunpack.c.l.b16 %v610
        %v811 = vunpack.c.l.b16 %v611
        %v812 = vunpack.c.l.b16 %v612
        %v813 = vunpack.c.l.b16 %v613
        %v814 = vunpack.c.l.b16 %v614
        %v815 = vunpack.c.l.b16 %v615
        %v816 = vunpack.c.l.b16 %v616
        %v817 = vunpack.c.l.b16 %v617
        %v818 = vunpack.c.l.b16 %v618
        %v819 = vunpack.c.l.b16 %v619
        %v820 = vunpack.c.l.b16 %v620
        %v821 = vunpack.c.l.b16 %v621
        %v822 = vunpack.c.l.b16 %v622
        %v823 = vunpack.c.l.b16 %v623
        %v824 = vunpack.c.l.b16 %v624
        %v825 = vunpack.c.l.b16 %v625
        %v826 = vunpack.c.l.b16 %v626
        %v827 = vunpack.c.l.b16 %v627
        %v828 = vunpack.c.l.b16 %v628
        %v829 = vunpack.c.l.b16 %v629
        %v830 = vunpack.c.l.b16 %v630
        %v831 = vunpack.c.l.b16 %v631
        %v832 = vunpack.c.l.b16 %v632
        %v833 = vunpack.c.l.b16 %v633
        %v834 = vunpack.c.l.b16 %v634
        %v835 = vunpack.c.l.b16 %v635
        %v836 = vunpack.c.l.b16 %v636
        %v837 = vunpack.c.l.b16 %v637
        %v838 = vunpack.c.l.b16 %v638
        %v839 = vunpack.c.l.b16 %v639
        %v840 = vunpack.c.l.b16 %v640
        %v841 = vunpack.c.l.b16 %v641
        %v842 = vunpack.c.l.b16 %v642
        %v843 = vunpack.c.l.b16 %v643
        %v844 = vunpack.c.l.b16 %v644
        %v845 = vunpack.c.l.b16 %v645
        %v846 = vunpack.c.l.b16 %v646
        %v847 = vunpack.c.l.b16 %v647
        %v848 = vunpack.c.l.b16 %v648
        %v849 = vunpack.c.l.b16 %v649
        %v850 = vunpack.c.l.b16 %v650
        %v851 = vunpack.c.l.b16 %v651
        %v852 = vunpack.c.l.b16 %v652
        %v853 = vunpack.c.l.b16 %v653
        %v854 = vunpack.c.l.b16 %v654
        %v855 = vunpack.c.l.b16 %v655
        %v856 = vunpack.c.l.b16 %v656
        %v857 = vunpack.c.l.b16 %v657
        %v858 = vpack.c.b16 %v761, %v760
        %v859 = vpack.c.b16 %v763, %v762
        %v860 = vpack.c.b16 %v765, %v764
        %v861 = vpack.c.b16 %v767, %v766
        %v862 = vpack.c.b16 %v769, %v768
        %v863 = vpack.c.b16 %v771, %v770
        %v864 = vpack.c.b16 %v773, %v772
        %v865 = vpack.c.b16 %v775, %v774
        %v866 = vpack.c.b16 %v777, %v776
        %v867 = vpack.c.b16 %v779, %v778
        %v868 = vpack.c.b16 %v781, %v780
        %v869 = vpack.c.b16 %v783, %v782
        %v870 = vpack.c.b16 %v785, %v784
        %v871 = vpack.c.b16 %v787, %v786
        %v872 = vpack.c.b16 %v789, %v788
        %v873 = vpack.c.b16 %v791, %v790
        %v874 = vpack.c.b16 %v793, %v792
        %v875 = vpack.c.b16 %v795, %v794
        %v876 = vpack.c.b16 %v797, %v796
        %v877 = vpack.c.b16 %v799, %v798
        %v878 = vpack.c.b16 %v801, %v800
        %v879 = vpack.c.b16 %v803, %v802
        %v880 = vpack.c.b16 %v805, %v804
        %v881 = vpack.c.b16 %v807, %v806
        %v882 = vpack.c.b16 %v809, %v808
        %v883 = vpack.c.b16 %v811, %v810
        %v884 = vpack.c.b16 %v813, %v812
        %v885 = vpack.c.b16 %v815, %v814
        %v886 = vpack.c.b16 %v817, %v816
        %v887 = vpack.c.b16 %v819, %v818
        %v888 = vpack.c.b16 %v821, %v820
        %v889 = vpack.c.b16 %v823, %v822
        %v890 = vpack.c.b16 %v825, %v824
        %v891 = vpack.c.b16 %v827, %v826
        %v892 = vpack.c.b16 %v829, %v828
        %v893 = vpack.c.b16 %v831, %v830
        %v894 = vpack.c.b16 %v833, %v832
        %v895 = vpack.c.b16 %v835, %v834
        %v896 = vpack.c.b16 %v837, %v836
        %v897 = vpack.c.b16 %v839, %v838
        %v898 = vpack.c.b16 %v841, %v840
        %v899 = vpack.c.b16 %v843, %v842
        %v900 = vpack.c.b16 %v845, %v844
        %v901 = vpack.c.b16 %v847, %v846
        %v902 = vpack.c.b16 %v849, %v848
        %v903 = vpack.c.b16 %v851, %v850
        %v904 = vpack.c.b16 %v853, %v852
        %v905 = vpack.c.b16 %v855, %v854
        %v906 = vpack.c.b16 %v857, %v856
        %vm956 = vcmask 130048
        %v958 = vsel %vm956, %v510, 0
        %v961 = vsel %vm956, %v517, 0
        %v964 = vsel %vm956, %v524, 0
        %v967 = vsel %vm956, %v531, 0
        %v970 = vsel %vm956, %v538, 0
        %v973 = vsel %vm956, %v545, 0
        %v976 = vsel %vm956, %v552, 0
        %v979 = vsel %vm956, %v559, 0
        %981 = vmatpush.bf16.msra.mxu0 %v865
        %982 = vmatpush.bf16.msra.mxu0 %v864
        %983 = vmatpush.bf16.msra.mxu0 %v863
        %984 = vmatpush.bf16.msra.mxu0 %v862
        %985 = vmatpush.bf16.msra.mxu0 %v861
        %986 = vmatpush.bf16.msra.mxu0 %v860
        %987 = vmatpush.bf16.msra.mxu0 %v859
        %988 = vmatpush.bf16.msra.mxu0 %v858
        %989 = vmatmul.bf16.gmra.mxu0 %v504
        %v990 = vpop.f32.mrf.mxu0
        %v991 = vadd.f32 %v660, %v990
        %v992 = vpop.f32.mrf.mxu0
        %v993 = vadd.f32 %v660, %v992
        %994 = vmatmul.bf16.gmra.mxu0 %v511
        %v995 = vpop.f32.mrf.mxu0
        %v996 = vadd.f32 %v660, %v995
        %v997 = vpop.f32.mrf.mxu0
        %v998 = vadd.f32 %v660, %v997
        %999 = vmatmul.bf16.gmra.mxu0 %v518
        %v1000 = vpop.f32.mrf.mxu0
        %v1001 = vadd.f32 %v660, %v1000
        %v1002 = vpop.f32.mrf.mxu0
        %v1003 = vadd.f32 %v660, %v1002
        %1004 = vmatmul.bf16.gmra.mxu0 %v525
        %v1005 = vpop.f32.mrf.mxu0
        %v1006 = vadd.f32 %v660, %v1005
        %v1007 = vpop.f32.mrf.mxu0
        %v1008 = vadd.f32 %v660, %v1007
        %1009 = vmatmul.bf16.gmra.mxu0 %v532
        %v1010 = vpop.f32.mrf.mxu0
        %v1011 = vadd.f32 %v660, %v1010
        %v1012 = vpop.f32.mrf.mxu0
        %v1013 = vadd.f32 %v660, %v1012
        %1014 = vmatmul.bf16.gmra.mxu0 %v539
        %v1015 = vpop.f32.mrf.mxu0
        %v1016 = vadd.f32 %v660, %v1015
        %v1017 = vpop.f32.mrf.mxu0
        %v1018 = vadd.f32 %v660, %v1017
        %1019 = vmatmul.bf16.gmra.mxu0 %v546
        %v1020 = vpop.f32.mrf.mxu0
        %v1021 = vadd.f32 %v660, %v1020
        %v1022 = vpop.f32.mrf.mxu0
        %v1023 = vadd.f32 %v660, %v1022
        %1024 = vmatmul.bf16.gmra.mxu0 %v553
        %v1025 = vpop.f32.mrf.mxu0
        %v1026 = vadd.f32 %v660, %v1025
        %v1027 = vpop.f32.mrf.mxu0
        %v1028 = vadd.f32 %v660, %v1027
        %1029 = vdwg.mxu0
        %1030 = vmatpush.bf16.msra.mxu0 %v873
        %1031 = vmatpush.bf16.msra.mxu0 %v872
        %1032 = vmatpush.bf16.msra.mxu0 %v871
        %1033 = vmatpush.bf16.msra.mxu0 %v870
        %1034 = vmatpush.bf16.msra.mxu0 %v869
        %1035 = vmatpush.bf16.msra.mxu0 %v868
        %1036 = vmatpush.bf16.msra.mxu0 %v867
        %1037 = vmatpush.bf16.msra.mxu0 %v866
        %1038 = vmatmul.bf16.gmra.mxu0 %v505
        %v1039 = vpop.f32.mrf.mxu0
        %v1040 = vadd.f32 %v991, %v1039
        %v1041 = vpop.f32.mrf.mxu0
        %v1042 = vadd.f32 %v993, %v1041
        %1043 = vmatmul.bf16.gmra.mxu0 %v512
        %v1044 = vpop.f32.mrf.mxu0
        %v1045 = vadd.f32 %v996, %v1044
        %v1046 = vpop.f32.mrf.mxu0
        %v1047 = vadd.f32 %v998, %v1046
        %1048 = vmatmul.bf16.gmra.mxu0 %v519
        %v1049 = vpop.f32.mrf.mxu0
        %v1050 = vadd.f32 %v1001, %v1049
        %v1051 = vpop.f32.mrf.mxu0
        %v1052 = vadd.f32 %v1003, %v1051
        %1053 = vmatmul.bf16.gmra.mxu0 %v526
        %v1054 = vpop.f32.mrf.mxu0
        %v1055 = vadd.f32 %v1006, %v1054
        %v1056 = vpop.f32.mrf.mxu0
        %v1057 = vadd.f32 %v1008, %v1056
        %1058 = vmatmul.bf16.gmra.mxu0 %v533
        %v1059 = vpop.f32.mrf.mxu0
        %v1060 = vadd.f32 %v1011, %v1059
        %v1061 = vpop.f32.mrf.mxu0
        %v1062 = vadd.f32 %v1013, %v1061
        %1063 = vmatmul.bf16.gmra.mxu0 %v540
        %v1064 = vpop.f32.mrf.mxu0
        %v1065 = vadd.f32 %v1016, %v1064
        %v1066 = vpop.f32.mrf.mxu0
        %v1067 = vadd.f32 %v1018, %v1066
        %1068 = vmatmul.bf16.gmra.mxu0 %v547
        %v1069 = vpop.f32.mrf.mxu0
        %v1070 = vadd.f32 %v1021, %v1069
        %v1071 = vpop.f32.mrf.mxu0
        %v1072 = vadd.f32 %v1023, %v1071
        %1073 = vmatmul.bf16.gmra.mxu0 %v554
        %v1074 = vpop.f32.mrf.mxu0
        %v1075 = vadd.f32 %v1026, %v1074
        %v1076 = vpop.f32.mrf.mxu0
        %v1077 = vadd.f32 %v1028, %v1076
        %1078 = vdwg.mxu0
        %1079 = vmatpush.bf16.msra.mxu0 %v881
        %1080 = vmatpush.bf16.msra.mxu0 %v880
        %1081 = vmatpush.bf16.msra.mxu0 %v879
        %1082 = vmatpush.bf16.msra.mxu0 %v878
        %1083 = vmatpush.bf16.msra.mxu0 %v877
        %1084 = vmatpush.bf16.msra.mxu0 %v876
        %1085 = vmatpush.bf16.msra.mxu0 %v875
        %1086 = vmatpush.bf16.msra.mxu0 %v874
        %1087 = vmatmul.bf16.gmra.mxu0 %v506
        %v1088 = vpop.f32.mrf.mxu0
        %v1089 = vadd.f32 %v1040, %v1088
        %v1090 = vpop.f32.mrf.mxu0
        %v1091 = vadd.f32 %v1042, %v1090
        %1092 = vmatmul.bf16.gmra.mxu0 %v513
        %v1093 = vpop.f32.mrf.mxu0
        %v1094 = vadd.f32 %v1045, %v1093
        %v1095 = vpop.f32.mrf.mxu0
        %v1096 = vadd.f32 %v1047, %v1095
        %1097 = vmatmul.bf16.gmra.mxu0 %v520
        %v1098 = vpop.f32.mrf.mxu0
        %v1099 = vadd.f32 %v1050, %v1098
        %v1100 = vpop.f32.mrf.mxu0
        %v1101 = vadd.f32 %v1052, %v1100
        %1102 = vmatmul.bf16.gmra.mxu0 %v527
        %v1103 = vpop.f32.mrf.mxu0
        %v1104 = vadd.f32 %v1055, %v1103
        %v1105 = vpop.f32.mrf.mxu0
        %v1106 = vadd.f32 %v1057, %v1105
        %1107 = vmatmul.bf16.gmra.mxu0 %v534
        %v1108 = vpop.f32.mrf.mxu0
        %v1109 = vadd.f32 %v1060, %v1108
        %v1110 = vpop.f32.mrf.mxu0
        %v1111 = vadd.f32 %v1062, %v1110
        %1112 = vmatmul.bf16.gmra.mxu0 %v541
        %v1113 = vpop.f32.mrf.mxu0
        %v1114 = vadd.f32 %v1065, %v1113
        %v1115 = vpop.f32.mrf.mxu0
        %v1116 = vadd.f32 %v1067, %v1115
        %1117 = vmatmul.bf16.gmra.mxu0 %v548
        %v1118 = vpop.f32.mrf.mxu0
        %v1119 = vadd.f32 %v1070, %v1118
        %v1120 = vpop.f32.mrf.mxu0
        %v1121 = vadd.f32 %v1072, %v1120
        %1122 = vmatmul.bf16.gmra.mxu0 %v555
        %v1123 = vpop.f32.mrf.mxu0
        %v1124 = vadd.f32 %v1075, %v1123
        %v1125 = vpop.f32.mrf.mxu0
        %v1126 = vadd.f32 %v1077, %v1125
        %1127 = vdwg.mxu0
        %1128 = vmatpush.bf16.msra.mxu0 %v889
        %1129 = vmatpush.bf16.msra.mxu0 %v888
        %1130 = vmatpush.bf16.msra.mxu0 %v887
        %1131 = vmatpush.bf16.msra.mxu0 %v886
        %1132 = vmatpush.bf16.msra.mxu0 %v885
        %1133 = vmatpush.bf16.msra.mxu0 %v884
        %1134 = vmatpush.bf16.msra.mxu0 %v883
        %1135 = vmatpush.bf16.msra.mxu0 %v882
        %1136 = vmatmul.bf16.gmra.mxu0 %v507
        %v1137 = vpop.f32.mrf.mxu0
        %v1138 = vadd.f32 %v1089, %v1137
        %v1139 = vpop.f32.mrf.mxu0
        %v1140 = vadd.f32 %v1091, %v1139
        %1141 = vmatmul.bf16.gmra.mxu0 %v514
        %v1142 = vpop.f32.mrf.mxu0
        %v1143 = vadd.f32 %v1094, %v1142
        %v1144 = vpop.f32.mrf.mxu0
        %v1145 = vadd.f32 %v1096, %v1144
        %1146 = vmatmul.bf16.gmra.mxu0 %v521
        %v1147 = vpop.f32.mrf.mxu0
        %v1148 = vadd.f32 %v1099, %v1147
        %v1149 = vpop.f32.mrf.mxu0
        %v1150 = vadd.f32 %v1101, %v1149
        %1151 = vmatmul.bf16.gmra.mxu0 %v528
        %v1152 = vpop.f32.mrf.mxu0
        %v1153 = vadd.f32 %v1104, %v1152
        %v1154 = vpop.f32.mrf.mxu0
        %v1155 = vadd.f32 %v1106, %v1154
        %1156 = vmatmul.bf16.gmra.mxu0 %v535
        %v1157 = vpop.f32.mrf.mxu0
        %v1158 = vadd.f32 %v1109, %v1157
        %v1159 = vpop.f32.mrf.mxu0
        %v1160 = vadd.f32 %v1111, %v1159
        %1161 = vmatmul.bf16.gmra.mxu0 %v542
        %v1162 = vpop.f32.mrf.mxu0
        %v1163 = vadd.f32 %v1114, %v1162
        %v1164 = vpop.f32.mrf.mxu0
        %v1165 = vadd.f32 %v1116, %v1164
        %1166 = vmatmul.bf16.gmra.mxu0 %v549
        %v1167 = vpop.f32.mrf.mxu0
        %v1168 = vadd.f32 %v1119, %v1167
        %v1169 = vpop.f32.mrf.mxu0
        %v1170 = vadd.f32 %v1121, %v1169
        %1171 = vmatmul.bf16.gmra.mxu0 %v556
        %v1172 = vpop.f32.mrf.mxu0
        %v1173 = vadd.f32 %v1124, %v1172
        %v1174 = vpop.f32.mrf.mxu0
        %v1175 = vadd.f32 %v1126, %v1174
        %1176 = vdwg.mxu0
        %1177 = vmatpush.bf16.msra.mxu0 %v897
        %1178 = vmatpush.bf16.msra.mxu0 %v896
        %1179 = vmatpush.bf16.msra.mxu0 %v895
        %1180 = vmatpush.bf16.msra.mxu0 %v894
        %1181 = vmatpush.bf16.msra.mxu0 %v893
        %1182 = vmatpush.bf16.msra.mxu0 %v892
        %1183 = vmatpush.bf16.msra.mxu0 %v891
        %1184 = vmatpush.bf16.msra.mxu0 %v890
        %1185 = vmatmul.bf16.gmra.mxu0 %v508
        %v1186 = vpop.f32.mrf.mxu0
        %v1187 = vadd.f32 %v1138, %v1186
        %v1188 = vpop.f32.mrf.mxu0
        %v1189 = vadd.f32 %v1140, %v1188
        %1190 = vmatmul.bf16.gmra.mxu0 %v515
        %v1191 = vpop.f32.mrf.mxu0
        %v1192 = vadd.f32 %v1143, %v1191
        %v1193 = vpop.f32.mrf.mxu0
        %v1194 = vadd.f32 %v1145, %v1193
        %1195 = vmatmul.bf16.gmra.mxu0 %v522
        %v1196 = vpop.f32.mrf.mxu0
        %v1197 = vadd.f32 %v1148, %v1196
        %v1198 = vpop.f32.mrf.mxu0
        %v1199 = vadd.f32 %v1150, %v1198
        %1200 = vmatmul.bf16.gmra.mxu0 %v529
        %v1201 = vpop.f32.mrf.mxu0
        %v1202 = vadd.f32 %v1153, %v1201
        %v1203 = vpop.f32.mrf.mxu0
        %v1204 = vadd.f32 %v1155, %v1203
        %1205 = vmatmul.bf16.gmra.mxu0 %v536
        %v1206 = vpop.f32.mrf.mxu0
        %v1207 = vadd.f32 %v1158, %v1206
        %v1208 = vpop.f32.mrf.mxu0
        %v1209 = vadd.f32 %v1160, %v1208
        %1210 = vmatmul.bf16.gmra.mxu0 %v543
        %v1211 = vpop.f32.mrf.mxu0
        %v1212 = vadd.f32 %v1163, %v1211
        %v1213 = vpop.f32.mrf.mxu0
        %v1214 = vadd.f32 %v1165, %v1213
        %1215 = vmatmul.bf16.gmra.mxu0 %v550
        %v1216 = vpop.f32.mrf.mxu0
        %v1217 = vadd.f32 %v1168, %v1216
        %v1218 = vpop.f32.mrf.mxu0
        %v1219 = vadd.f32 %v1170, %v1218
        %1220 = vmatmul.bf16.gmra.mxu0 %v557
        %v1221 = vpop.f32.mrf.mxu0
        %v1222 = vadd.f32 %v1173, %v1221
        %v1223 = vpop.f32.mrf.mxu0
        %v1224 = vadd.f32 %v1175, %v1223
        %1225 = vdwg.mxu0
        %1226 = vmatpush.bf16.msra.mxu0 %v905
        %1227 = vmatpush.bf16.msra.mxu0 %v904
        %1228 = vmatpush.bf16.msra.mxu0 %v903
        %1229 = vmatpush.bf16.msra.mxu0 %v902
        %1230 = vmatpush.bf16.msra.mxu0 %v901
        %1231 = vmatpush.bf16.msra.mxu0 %v900
        %1232 = vmatpush.bf16.msra.mxu0 %v899
        %1233 = vmatpush.bf16.msra.mxu0 %v898
        %1234 = vmatmul.bf16.gmra.mxu0 %v509
        %v1235 = vpop.f32.mrf.mxu0
        %v1236 = vadd.f32 %v1187, %v1235
        %v1237 = vpop.f32.mrf.mxu0
        %v1238 = vadd.f32 %v1189, %v1237
        %1239 = vmatmul.bf16.gmra.mxu0 %v516
        %v1240 = vpop.f32.mrf.mxu0
        %v1241 = vadd.f32 %v1192, %v1240
        %v1242 = vpop.f32.mrf.mxu0
        %v1243 = vadd.f32 %v1194, %v1242
        %1244 = vmatmul.bf16.gmra.mxu0 %v523
        %v1245 = vpop.f32.mrf.mxu0
        %v1246 = vadd.f32 %v1197, %v1245
        %v1247 = vpop.f32.mrf.mxu0
        %v1248 = vadd.f32 %v1199, %v1247
        %1249 = vmatmul.bf16.gmra.mxu0 %v530
        %v1250 = vpop.f32.mrf.mxu0
        %v1251 = vadd.f32 %v1202, %v1250
        %v1252 = vpop.f32.mrf.mxu0
        %v1253 = vadd.f32 %v1204, %v1252
        %1254 = vmatmul.bf16.gmra.mxu0 %v537
        %v1255 = vpop.f32.mrf.mxu0
        %v1256 = vadd.f32 %v1207, %v1255
        %v1257 = vpop.f32.mrf.mxu0
        %v1258 = vadd.f32 %v1209, %v1257
        %1259 = vmatmul.bf16.gmra.mxu0 %v544
        %v1260 = vpop.f32.mrf.mxu0
        %v1261 = vadd.f32 %v1212, %v1260
        %v1262 = vpop.f32.mrf.mxu0
        %v1263 = vadd.f32 %v1214, %v1262
        %1264 = vmatmul.bf16.gmra.mxu0 %v551
        %v1265 = vpop.f32.mrf.mxu0
        %v1266 = vadd.f32 %v1217, %v1265
        %v1267 = vpop.f32.mrf.mxu0
        %v1268 = vadd.f32 %v1219, %v1267
        %1269 = vmatmul.bf16.gmra.mxu0 %v558
        %v1270 = vpop.f32.mrf.mxu0
        %v1271 = vadd.f32 %v1222, %v1270
        %v1272 = vpop.f32.mrf.mxu0
        %v1273 = vadd.f32 %v1224, %v1272
        %1274 = vdwg.mxu0
        %1275 = vmatpush.bf16.msra.mxu0 0
        %1276 = vmatpush.bf16.msra.mxu0 0
        %1277 = vmatpush.bf16.msra.mxu0 0
        %1278 = vmatpush.bf16.msra.mxu0 0
        %1279 = vmatpush.bf16.msra.mxu0 0
        %1280 = vmatpush.bf16.msra.mxu0 0
        %1281 = vmatpush.bf16.msra.mxu0 0
        %1282 = vmatpush.bf16.msra.mxu0 %v906
        %1283 = vmatmul.bf16.gmra.mxu0 %v958
        %v1284 = vpop.f32.mrf.mxu0
        %v1285 = vadd.f32 %v1236, %v1284
        %v1286 = vpop.f32.mrf.mxu0
        %v1287 = vadd.f32 %v1238, %v1286
        %1288 = vmatmul.bf16.gmra.mxu0 %v961
        %v1289 = vpop.f32.mrf.mxu0
        %v1290 = vadd.f32 %v1241, %v1289
        %v1291 = vpop.f32.mrf.mxu0
        %v1292 = vadd.f32 %v1243, %v1291
        %1293 = vmatmul.bf16.gmra.mxu0 %v964
        %v1294 = vpop.f32.mrf.mxu0
        %v1295 = vadd.f32 %v1246, %v1294
        %v1296 = vpop.f32.mrf.mxu0
        %v1297 = vadd.f32 %v1248, %v1296
        %1298 = vmatmul.bf16.gmra.mxu0 %v967
        %v1299 = vpop.f32.mrf.mxu0
        %v1300 = vadd.f32 %v1251, %v1299
        %v1301 = vpop.f32.mrf.mxu0
        %v1302 = vadd.f32 %v1253, %v1301
        %1303 = vmatmul.bf16.gmra.mxu0 %v970
        %v1304 = vpop.f32.mrf.mxu0
        %v1305 = vadd.f32 %v1256, %v1304
        %v1306 = vpop.f32.mrf.mxu0
        %v1307 = vadd.f32 %v1258, %v1306
        %1308 = vmatmul.bf16.gmra.mxu0 %v973
        %v1309 = vpop.f32.mrf.mxu0
        %v1310 = vadd.f32 %v1261, %v1309
        %v1311 = vpop.f32.mrf.mxu0
        %v1312 = vadd.f32 %v1263, %v1311
        %1313 = vmatmul.bf16.gmra.mxu0 %v976
        %v1314 = vpop.f32.mrf.mxu0
        %v1315 = vadd.f32 %v1266, %v1314
        %v1316 = vpop.f32.mrf.mxu0
        %v1317 = vadd.f32 %v1268, %v1316
        %1318 = vmatmul.bf16.gmra.mxu0 %v979
        %v1319 = vpop.f32.mrf.mxu0
        %v1320 = vadd.f32 %v1271, %v1319
        %v1321 = vpop.f32.mrf.mxu0
        %v1322 = vadd.f32 %v1273, %v1321
        %1323 = vdwg.mxu0
        %v1324 = vmax.f32 %v1285, 0.0
        %v1325 = vmax.f32 %v1287, 0.0
        %v1326 = vmax.f32 %v1290, 0.0
        %v1327 = vmax.f32 %v1292, 0.0
        %v1328 = vmax.f32 %v1295, 0.0
        %v1329 = vmax.f32 %v1297, 0.0
        %v1330 = vmax.f32 %v1300, 0.0
        %v1331 = vmax.f32 %v1302, 0.0
        %v1332 = vmax.f32 %v1305, 0.0
        %v1333 = vmax.f32 %v1307, 0.0
        %v1334 = vmax.f32 %v1310, 0.0
        %v1335 = vmax.f32 %v1312, 0.0
        %v1336 = vmax.f32 %v1315, 0.0
        %v1337 = vmax.f32 %v1317, 0.0
        %v1338 = vmax.f32 %v1320, 0.0
        %v1339 = vmax.f32 %v1322, 0.0
        %v1340 = vpack.c.bf16 %v1325, %v1324
        %v1341 = vpack.c.bf16 %v1327, %v1326
        %v1342 = vpack.c.bf16 %v1329, %v1328
        %v1343 = vpack.c.bf16 %v1331, %v1330
        %v1344 = vpack.c.bf16 %v1333, %v1332
        %v1345 = vpack.c.bf16 %v1335, %v1334
        %v1346 = vpack.c.bf16 %v1337, %v1336
        %v1347 = vpack.c.bf16 %v1339, %v1338
        %v1348 = vld [vmem:[%s3] sm:$0xf]
        %v1349 = vld [vmem:[%s3 + $0x4] sm:$0xf]
        %v1350 = vld [vmem:[%s3 + $0x8] sm:$0xf]
        %v1351 = vld [vmem:[%s3 + $0xc] sm:$0xf]
        %v1352 = vld [vmem:[%s4] sm:$0x1]
        %v1354 = vperm.slane %v1352, 0
        %v1360 = vunpack.c.l.b16 %v1348
        %v1361 = vunpack.c.l.b16 %v1349
        %v1362 = vunpack.c.l.b16 %v1350
        %v1363 = vunpack.c.l.b16 %v1351
        %v1364 = vpack.c.b16 %v1361, %v1360
        %v1365 = vpack.c.b16 %v1363, %v1362
        %vm1368 = vcmask 261120
        %v1370 = vsel %vm1368, %v1340, 0
        %v1373 = vsel %vm1368, %v1341, 0
        %v1376 = vsel %vm1368, %v1342, 0
        %v1379 = vsel %vm1368, %v1343, 0
        %v1382 = vsel %vm1368, %v1344, 0
        %v1385 = vsel %vm1368, %v1345, 0
        %v1388 = vsel %vm1368, %v1346, 0
        %v1391 = vsel %vm1368, %v1347, 0
        %1393 = vmatpush.bf16.msra.mxu0 0
        %1394 = vmatpush.bf16.msra.mxu0 0
        %1395 = vmatpush.bf16.msra.mxu0 0
        %1396 = vmatpush.bf16.msra.mxu0 0
        %1397 = vmatpush.bf16.msra.mxu0 0
        %1398 = vmatpush.bf16.msra.mxu0 0
        %1399 = vmatpush.bf16.msra.mxu0 %v1365
        %1400 = vmatpush.bf16.msra.mxu0 %v1364
        %1401 = vmatmul.bf16.gmra.mxu0 %v1370
        %v1402 = vpop.f32.mrf.mxu0
        %v1403 = vadd.f32 %v1354, %v1402
        %v1404 = vpop.f32.mrf.mxu0
        %v1405 = vadd.f32 %v1354, %v1404
        %1406 = vmatmul.bf16.gmra.mxu0 %v1373
        %v1407 = vpop.f32.mrf.mxu0
        %v1408 = vadd.f32 %v1354, %v1407
        %v1409 = vpop.f32.mrf.mxu0
        %v1410 = vadd.f32 %v1354, %v1409
        %1411 = vmatmul.bf16.gmra.mxu0 %v1376
        %v1412 = vpop.f32.mrf.mxu0
        %v1413 = vadd.f32 %v1354, %v1412
        %v1414 = vpop.f32.mrf.mxu0
        %v1415 = vadd.f32 %v1354, %v1414
        %1416 = vmatmul.bf16.gmra.mxu0 %v1379
        %v1417 = vpop.f32.mrf.mxu0
        %v1418 = vadd.f32 %v1354, %v1417
        %v1419 = vpop.f32.mrf.mxu0
        %v1420 = vadd.f32 %v1354, %v1419
        %1421 = vmatmul.bf16.gmra.mxu0 %v1382
        %v1422 = vpop.f32.mrf.mxu0
        %v1423 = vadd.f32 %v1354, %v1422
        %v1424 = vpop.f32.mrf.mxu0
        %v1425 = vadd.f32 %v1354, %v1424
        %1426 = vmatmul.bf16.gmra.mxu0 %v1385
        %v1427 = vpop.f32.mrf.mxu0
        %v1428 = vadd.f32 %v1354, %v1427
        %v1429 = vpop.f32.mrf.mxu0
        %v1430 = vadd.f32 %v1354, %v1429
        %1431 = vmatmul.bf16.gmra.mxu0 %v1388
        %v1432 = vpop.f32.mrf.mxu0
        %v1433 = vadd.f32 %v1354, %v1432
        %v1434 = vpop.f32.mrf.mxu0
        %v1435 = vadd.f32 %v1354, %v1434
        %1436 = vmatmul.bf16.gmra.mxu0 %v1391
        %v1437 = vpop.f32.mrf.mxu0
        %v1438 = vadd.f32 %v1354, %v1437
        %v1439 = vpop.f32.mrf.mxu0
        %v1440 = vadd.f32 %v1354, %v1439
        %1441 = vdwg.mxu0
        %v1442 = vmax.f32 %v1403, 0.0
        %v1443 = vmax.f32 %v1405, 0.0
        %v1444 = vmax.f32 %v1408, 0.0
        %v1445 = vmax.f32 %v1410, 0.0
        %v1446 = vmax.f32 %v1413, 0.0
        %v1447 = vmax.f32 %v1415, 0.0
        %v1448 = vmax.f32 %v1418, 0.0
        %v1449 = vmax.f32 %v1420, 0.0
        %v1450 = vmax.f32 %v1423, 0.0
        %v1451 = vmax.f32 %v1425, 0.0
        %v1452 = vmax.f32 %v1428, 0.0
        %v1453 = vmax.f32 %v1430, 0.0
        %v1454 = vmax.f32 %v1433, 0.0
        %v1455 = vmax.f32 %v1435, 0.0
        %v1456 = vmax.f32 %v1438, 0.0
        %v1457 = vmax.f32 %v1440, 0.0
        %v1458 = vpack.c.bf16 %v1443, %v1442
        %v1459 = vpack.c.bf16 %v1445, %v1444
        %v1460 = vpack.c.bf16 %v1447, %v1446
        %v1461 = vpack.c.bf16 %v1449, %v1448
        %v1462 = vpack.c.bf16 %v1451, %v1450
        %v1463 = vpack.c.bf16 %v1453, %v1452
        %v1464 = vpack.c.bf16 %v1455, %v1454
        %v1465 = vpack.c.bf16 %v1457, %v1456
        %v1466 = vld [vmem:[%s5] sm:$0xf]
        %v1467 = vld [vmem:[%s5 + $0x4] sm:$0xf]
        %v1468 = vld [vmem:[%s5 + $0x8] sm:$0xf]
        %v1469 = vld [vmem:[%s5 + $0xc] sm:$0xf]
        %v1470 = vld [vmem:[%s5 + $0x10] sm:$0xf]
        %v1471 = vld [vmem:[%s5 + $0x14] sm:$0xf]
        %v1472 = vld [vmem:[%s5 + $0x18] sm:$0xf]
        %v1473 = vld [vmem:[%s5 + $0x1c] sm:$0xf]
        %v1474 = vld [vmem:[%s6] sm:$0x1]
        %v1476 = vperm.slane %v1474, 0
        %v1486 = vunpack.c.l.b16 %v1466
        %v1487 = vunpack.c.l.b16 %v1467
        %v1488 = vunpack.c.l.b16 %v1468
        %v1489 = vunpack.c.l.b16 %v1469
        %v1490 = vunpack.c.l.b16 %v1470
        %v1491 = vunpack.c.l.b16 %v1471
        %v1492 = vunpack.c.l.b16 %v1472
        %v1493 = vunpack.c.l.b16 %v1473
        %v1494 = vpack.c.b16 %v1487, %v1486
        %v1495 = vpack.c.b16 %v1489, %v1488
        %v1496 = vpack.c.b16 %v1491, %v1490
        %v1497 = vpack.c.b16 %v1493, %v1492
        %vm1502 = vcmask 523264
        %v1504 = vsel %vm1502, %v1458, 0
        %v1507 = vsel %vm1502, %v1459, 0
        %v1510 = vsel %vm1502, %v1460, 0
        %v1513 = vsel %vm1502, %v1461, 0
        %v1516 = vsel %vm1502, %v1462, 0
        %v1519 = vsel %vm1502, %v1463, 0
        %v1522 = vsel %vm1502, %v1464, 0
        %v1525 = vsel %vm1502, %v1465, 0
        %1527 = vmatpush.bf16.msra.mxu0 0
        %1528 = vmatpush.bf16.msra.mxu0 0
        %1529 = vmatpush.bf16.msra.mxu0 0
        %1530 = vmatpush.bf16.msra.mxu0 0
        %1531 = vmatpush.bf16.msra.mxu0 %v1497
        %1532 = vmatpush.bf16.msra.mxu0 %v1496
        %1533 = vmatpush.bf16.msra.mxu0 %v1495
        %1534 = vmatpush.bf16.msra.mxu0 %v1494
        %1535 = vmatmul.bf16.gmra.mxu0 %v1504
        %v1536 = vpop.f32.mrf.mxu0
        %v1537 = vadd.f32 %v1476, %v1536
        %v1538 = vpop.f32.mrf.mxu0
        %v1539 = vadd.f32 %v1476, %v1538
        %1540 = vmatmul.bf16.gmra.mxu0 %v1507
        %v1541 = vpop.f32.mrf.mxu0
        %v1542 = vadd.f32 %v1476, %v1541
        %v1543 = vpop.f32.mrf.mxu0
        %v1544 = vadd.f32 %v1476, %v1543
        %1545 = vmatmul.bf16.gmra.mxu0 %v1510
        %v1546 = vpop.f32.mrf.mxu0
        %v1547 = vadd.f32 %v1476, %v1546
        %v1548 = vpop.f32.mrf.mxu0
        %v1549 = vadd.f32 %v1476, %v1548
        %1550 = vmatmul.bf16.gmra.mxu0 %v1513
        %v1551 = vpop.f32.mrf.mxu0
        %v1552 = vadd.f32 %v1476, %v1551
        %v1553 = vpop.f32.mrf.mxu0
        %v1554 = vadd.f32 %v1476, %v1553
        %1555 = vmatmul.bf16.gmra.mxu0 %v1516
        %v1556 = vpop.f32.mrf.mxu0
        %v1557 = vadd.f32 %v1476, %v1556
        %v1558 = vpop.f32.mrf.mxu0
        %v1559 = vadd.f32 %v1476, %v1558
        %1560 = vmatmul.bf16.gmra.mxu0 %v1519
        %v1561 = vpop.f32.mrf.mxu0
        %v1562 = vadd.f32 %v1476, %v1561
        %v1563 = vpop.f32.mrf.mxu0
        %v1564 = vadd.f32 %v1476, %v1563
        %1565 = vmatmul.bf16.gmra.mxu0 %v1522
        %v1566 = vpop.f32.mrf.mxu0
        %v1567 = vadd.f32 %v1476, %v1566
        %v1568 = vpop.f32.mrf.mxu0
        %v1569 = vadd.f32 %v1476, %v1568
        %1570 = vmatmul.bf16.gmra.mxu0 %v1525
        %v1571 = vpop.f32.mrf.mxu0
        %v1572 = vadd.f32 %v1476, %v1571
        %v1573 = vpop.f32.mrf.mxu0
        %v1574 = vadd.f32 %v1476, %v1573
        %1575 = vdwg.mxu0
        %v1576 = vmax.f32 %v1537, 0.0
        %v1577 = vmax.f32 %v1539, 0.0
        %v1578 = vmax.f32 %v1542, 0.0
        %v1579 = vmax.f32 %v1544, 0.0
        %v1580 = vmax.f32 %v1547, 0.0
        %v1581 = vmax.f32 %v1549, 0.0
        %v1582 = vmax.f32 %v1552, 0.0
        %v1583 = vmax.f32 %v1554, 0.0
        %v1584 = vmax.f32 %v1557, 0.0
        %v1585 = vmax.f32 %v1559, 0.0
        %v1586 = vmax.f32 %v1562, 0.0
        %v1587 = vmax.f32 %v1564, 0.0
        %v1588 = vmax.f32 %v1567, 0.0
        %v1589 = vmax.f32 %v1569, 0.0
        %v1590 = vmax.f32 %v1572, 0.0
        %v1591 = vmax.f32 %v1574, 0.0
        %v1592 = vpack.c.bf16 %v1577, %v1576
        %v1593 = vpack.c.bf16 %v1579, %v1578
        %v1594 = vpack.c.bf16 %v1581, %v1580
        %v1595 = vpack.c.bf16 %v1583, %v1582
        %v1596 = vpack.c.bf16 %v1585, %v1584
        %v1597 = vpack.c.bf16 %v1587, %v1586
        %v1598 = vpack.c.bf16 %v1589, %v1588
        %v1599 = vpack.c.bf16 %v1591, %v1590
        %v1600 = vld [vmem:[%s7] sm:$0xff]
        %v1601 = vld [vmem:[%s7 + $0x8] sm:$0xff]
        %v1602 = vld [vmem:[%s7 + $0x10] sm:$0xff]
        %v1603 = vld [vmem:[%s7 + $0x18] sm:$0xff]
        %v1604 = vld [vmem:[%s7 + $0x20] sm:$0xff]
        %v1605 = vld [vmem:[%s7 + $0x28] sm:$0xff]
        %v1606 = vld [vmem:[%s7 + $0x30] sm:$0xff]
        %v1607 = vld [vmem:[%s7 + $0x38] sm:$0xff]
        %v1608 = vld [vmem:[%s7 + $0x40] sm:$0xff]
        %v1609 = vld [vmem:[%s7 + $0x48] sm:$0xff]
        %v1610 = vld [vmem:[%s7 + $0x50] sm:$0xff]
        %v1611 = vld [vmem:[%s7 + $0x58] sm:$0xff]
        %v1612 = vld [vmem:[%s7 + $0x60] sm:$0xff]
        %v1613 = vld [vmem:[%s7 + $0x68] sm:$0xff]
        %v1614 = vld [vmem:[%s7 + $0x70] sm:$0xff]
        %v1615 = vld [vmem:[%s7 + $0x78] sm:$0xff]
        %v1616 = vld [vmem:[%s8] sm:$0x3]
        %v1618 = vperm.slane %v1616, 0
        %v1619 = vperm.slane %v1616, 1
        %v1638 = vunpack.c.l.b16 %v1600
        %v1639 = vunpack.c.h.b16 %v1600
        %v1640 = vunpack.c.l.b16 %v1601
        %v1641 = vunpack.c.h.b16 %v1601
        %v1642 = vunpack.c.l.b16 %v1602
        %v1643 = vunpack.c.h.b16 %v1602
        %v1644 = vunpack.c.l.b16 %v1603
        %v1645 = vunpack.c.h.b16 %v1603
        %v1646 = vunpack.c.l.b16 %v1604
        %v1647 = vunpack.c.h.b16 %v1604
        %v1648 = vunpack.c.l.b16 %v1605
        %v1649 = vunpack.c.h.b16 %v1605
        %v1650 = vunpack.c.l.b16 %v1606
        %v1651 = vunpack.c.h.b16 %v1606
        %v1652 = vunpack.c.l.b16 %v1607
        %v1653 = vunpack.c.h.b16 %v1607
        %v1654 = vunpack.c.l.b16 %v1608
        %v1655 = vunpack.c.h.b16 %v1608
        %v1656 = vunpack.c.l.b16 %v1609
        %v1657 = vunpack.c.h.b16 %v1609
        %v1658 = vunpack.c.l.b16 %v1610
        %v1659 = vunpack.c.h.b16 %v1610
        %v1660 = vunpack.c.l.b16 %v1611
        %v1661 = vunpack.c.h.b16 %v1611
        %v1662 = vunpack.c.l.b16 %v1612
        %v1663 = vunpack.c.h.b16 %v1612
        %v1664 = vunpack.c.l.b16 %v1613
        %v1665 = vunpack.c.h.b16 %v1613
        %v1666 = vunpack.c.l.b16 %v1614
        %v1667 = vunpack.c.h.b16 %v1614
        %v1668 = vunpack.c.l.b16 %v1615
        %v1669 = vunpack.c.h.b16 %v1615
        %v1670 = vpack.c.b16 %v1640, %v1638
        %v1671 = vpack.c.b16 %v1641, %v1639
        %v1672 = vpack.c.b16 %v1644, %v1642
        %v1673 = vpack.c.b16 %v1645, %v1643
        %v1674 = vpack.c.b16 %v1648, %v1646
        %v1675 = vpack.c.b16 %v1649, %v1647
        %v1676 = vpack.c.b16 %v1652, %v1650
        %v1677 = vpack.c.b16 %v1653, %v1651
        %v1678 = vpack.c.b16 %v1656, %v1654
        %v1679 = vpack.c.b16 %v1657, %v1655
        %v1680 = vpack.c.b16 %v1660, %v1658
        %v1681 = vpack.c.b16 %v1661, %v1659
        %v1682 = vpack.c.b16 %v1664, %v1662
        %v1683 = vpack.c.b16 %v1665, %v1663
        %v1684 = vpack.c.b16 %v1668, %v1666
        %v1685 = vpack.c.b16 %v1669, %v1667
        %1702 = vmatpush.bf16.msra.mxu0 %v1684
        %1703 = vmatpush.bf16.msra.mxu0 %v1682
        %1704 = vmatpush.bf16.msra.mxu0 %v1680
        %1705 = vmatpush.bf16.msra.mxu0 %v1678
        %1706 = vmatpush.bf16.msra.mxu0 %v1676
        %1707 = vmatpush.bf16.msra.mxu0 %v1674
        %1708 = vmatpush.bf16.msra.mxu0 %v1672
        %1709 = vmatpush.bf16.msra.mxu0 %v1670
        %1710 = vmatmul.bf16.gmra.mxu0 %v1592
        %v1711 = vpop.f32.mrf.mxu0
        %v1712 = vadd.f32 %v1618, %v1711
        %v1713 = vpop.f32.mrf.mxu0
        %v1714 = vadd.f32 %v1618, %v1713
        %1715 = vmatmul.bf16.gmra.mxu0 %v1593
        %v1716 = vpop.f32.mrf.mxu0
        %v1717 = vadd.f32 %v1618, %v1716
        %v1718 = vpop.f32.mrf.mxu0
        %v1719 = vadd.f32 %v1618, %v1718
        %1720 = vmatmul.bf16.gmra.mxu0 %v1594
        %v1721 = vpop.f32.mrf.mxu0
        %v1722 = vadd.f32 %v1618, %v1721
        %v1723 = vpop.f32.mrf.mxu0
        %v1724 = vadd.f32 %v1618, %v1723
        %1725 = vmatmul.bf16.gmra.mxu0 %v1595
        %v1726 = vpop.f32.mrf.mxu0
        %v1727 = vadd.f32 %v1618, %v1726
        %v1728 = vpop.f32.mrf.mxu0
        %v1729 = vadd.f32 %v1618, %v1728
        %1730 = vmatmul.bf16.gmra.mxu0 %v1596
        %v1731 = vpop.f32.mrf.mxu0
        %v1732 = vadd.f32 %v1618, %v1731
        %v1733 = vpop.f32.mrf.mxu0
        %v1734 = vadd.f32 %v1618, %v1733
        %1735 = vmatmul.bf16.gmra.mxu0 %v1597
        %v1736 = vpop.f32.mrf.mxu0
        %v1737 = vadd.f32 %v1618, %v1736
        %v1738 = vpop.f32.mrf.mxu0
        %v1739 = vadd.f32 %v1618, %v1738
        %1740 = vmatmul.bf16.gmra.mxu0 %v1598
        %v1741 = vpop.f32.mrf.mxu0
        %v1742 = vadd.f32 %v1618, %v1741
        %v1743 = vpop.f32.mrf.mxu0
        %v1744 = vadd.f32 %v1618, %v1743
        %1745 = vmatmul.bf16.gmra.mxu0 %v1599
        %v1746 = vpop.f32.mrf.mxu0
        %v1747 = vadd.f32 %v1618, %v1746
        %v1748 = vpop.f32.mrf.mxu0
        %v1749 = vadd.f32 %v1618, %v1748
        %1750 = vdwg.mxu0
        %1751 = vmatpush.bf16.msra.mxu0 %v1685
        %1752 = vmatpush.bf16.msra.mxu0 %v1683
        %1753 = vmatpush.bf16.msra.mxu0 %v1681
        %1754 = vmatpush.bf16.msra.mxu0 %v1679
        %1755 = vmatpush.bf16.msra.mxu0 %v1677
        %1756 = vmatpush.bf16.msra.mxu0 %v1675
        %1757 = vmatpush.bf16.msra.mxu0 %v1673
        %1758 = vmatpush.bf16.msra.mxu0 %v1671
        %1759 = vmatmul.bf16.gmra.mxu0 %v1592
        %v1760 = vpop.f32.mrf.mxu0
        %v1761 = vadd.f32 %v1619, %v1760
        %v1762 = vpop.f32.mrf.mxu0
        %v1763 = vadd.f32 %v1619, %v1762
        %1764 = vmatmul.bf16.gmra.mxu0 %v1593
        %v1765 = vpop.f32.mrf.mxu0
        %v1766 = vadd.f32 %v1619, %v1765
        %v1767 = vpop.f32.mrf.mxu0
        %v1768 = vadd.f32 %v1619, %v1767
        %1769 = vmatmul.bf16.gmra.mxu0 %v1594
        %v1770 = vpop.f32.mrf.mxu0
        %v1771 = vadd.f32 %v1619, %v1770
        %v1772 = vpop.f32.mrf.mxu0
        %v1773 = vadd.f32 %v1619, %v1772
        %1774 = vmatmul.bf16.gmra.mxu0 %v1595
        %v1775 = vpop.f32.mrf.mxu0
        %v1776 = vadd.f32 %v1619, %v1775
        %v1777 = vpop.f32.mrf.mxu0
        %v1778 = vadd.f32 %v1619, %v1777
        %1779 = vmatmul.bf16.gmra.mxu0 %v1596
        %v1780 = vpop.f32.mrf.mxu0
        %v1781 = vadd.f32 %v1619, %v1780
        %v1782 = vpop.f32.mrf.mxu0
        %v1783 = vadd.f32 %v1619, %v1782
        %1784 = vmatmul.bf16.gmra.mxu0 %v1597
        %v1785 = vpop.f32.mrf.mxu0
        %v1786 = vadd.f32 %v1619, %v1785
        %v1787 = vpop.f32.mrf.mxu0
        %v1788 = vadd.f32 %v1619, %v1787
        %1789 = vmatmul.bf16.gmra.mxu0 %v1598
        %v1790 = vpop.f32.mrf.mxu0
        %v1791 = vadd.f32 %v1619, %v1790
        %v1792 = vpop.f32.mrf.mxu0
        %v1793 = vadd.f32 %v1619, %v1792
        %1794 = vmatmul.bf16.gmra.mxu0 %v1599
        %v1795 = vpop.f32.mrf.mxu0
        %v1796 = vadd.f32 %v1619, %v1795
        %v1797 = vpop.f32.mrf.mxu0
        %v1798 = vadd.f32 %v1619, %v1797
        %1799 = vdwg.mxu0
        %v1800 = vmax.f32 %v1712, 0.0
        %v1801 = vmax.f32 %v1761, 0.0
        %v1802 = vmax.f32 %v1714, 0.0
        %v1803 = vmax.f32 %v1763, 0.0
        %v1804 = vmax.f32 %v1717, 0.0
        %v1805 = vmax.f32 %v1766, 0.0
        %v1806 = vmax.f32 %v1719, 0.0
        %v1807 = vmax.f32 %v1768, 0.0
        %v1808 = vmax.f32 %v1722, 0.0
        %v1809 = vmax.f32 %v1771, 0.0
        %v1810 = vmax.f32 %v1724, 0.0
        %v1811 = vmax.f32 %v1773, 0.0
        %v1812 = vmax.f32 %v1727, 0.0
        %v1813 = vmax.f32 %v1776, 0.0
        %v1814 = vmax.f32 %v1729, 0.0
        %v1815 = vmax.f32 %v1778, 0.0
        %v1816 = vmax.f32 %v1732, 0.0
        %v1817 = vmax.f32 %v1781, 0.0
        %v1818 = vmax.f32 %v1734, 0.0
        %v1819 = vmax.f32 %v1783, 0.0
        %v1820 = vmax.f32 %v1737, 0.0
        %v1821 = vmax.f32 %v1786, 0.0
        %v1822 = vmax.f32 %v1739, 0.0
        %v1823 = vmax.f32 %v1788, 0.0
        %v1824 = vmax.f32 %v1742, 0.0
        %v1825 = vmax.f32 %v1791, 0.0
        %v1826 = vmax.f32 %v1744, 0.0
        %v1827 = vmax.f32 %v1793, 0.0
        %v1828 = vmax.f32 %v1747, 0.0
        %v1829 = vmax.f32 %v1796, 0.0
        %v1830 = vmax.f32 %v1749, 0.0
        %v1831 = vmax.f32 %v1798, 0.0
        %v1832 = vpack.c.bf16 %v1802, %v1800
        %v1833 = vpack.c.bf16 %v1803, %v1801
        %v1834 = vpack.c.bf16 %v1806, %v1804
        %v1835 = vpack.c.bf16 %v1807, %v1805
        %v1836 = vpack.c.bf16 %v1810, %v1808
        %v1837 = vpack.c.bf16 %v1811, %v1809
        %v1838 = vpack.c.bf16 %v1814, %v1812
        %v1839 = vpack.c.bf16 %v1815, %v1813
        %v1840 = vpack.c.bf16 %v1818, %v1816
        %v1841 = vpack.c.bf16 %v1819, %v1817
        %v1842 = vpack.c.bf16 %v1822, %v1820
        %v1843 = vpack.c.bf16 %v1823, %v1821
        %v1844 = vpack.c.bf16 %v1826, %v1824
        %v1845 = vpack.c.bf16 %v1827, %v1825
        %v1846 = vpack.c.bf16 %v1830, %v1828
        %v1847 = vpack.c.bf16 %v1831, %v1829
        %v1848 = vld [vmem:[%s9] sm:$0xf]
        %v1849 = vld [vmem:[%s9 + $0x4] sm:$0xf]
        %v1850 = vld [vmem:[%s9 + $0x8] sm:$0xf]
        %v1851 = vld [vmem:[%s9 + $0xc] sm:$0xf]
        %v1852 = vld [vmem:[%s9 + $0x10] sm:$0xf]
        %v1853 = vld [vmem:[%s9 + $0x14] sm:$0xf]
        %v1854 = vld [vmem:[%s9 + $0x18] sm:$0xf]
        %v1855 = vld [vmem:[%s9 + $0x1c] sm:$0xf]
        %v1856 = vld [vmem:[%s9 + $0x20] sm:$0xf]
        %v1857 = vld [vmem:[%s9 + $0x24] sm:$0xf]
        %v1858 = vld [vmem:[%s9 + $0x28] sm:$0xf]
        %v1859 = vld [vmem:[%s9 + $0x2c] sm:$0xf]
        %v1860 = vld [vmem:[%s9 + $0x30] sm:$0xf]
        %v1861 = vld [vmem:[%s9 + $0x34] sm:$0xf]
        %v1862 = vld [vmem:[%s9 + $0x38] sm:$0xf]
        %v1863 = vld [vmem:[%s9 + $0x3c] sm:$0xf]
        %v1864 = vld [vmem:[%s9 + $0x40] sm:$0xf]
        %v1865 = vld [vmem:[%s9 + $0x44] sm:$0xf]
        %v1866 = vld [vmem:[%s9 + $0x48] sm:$0xf]
        %v1867 = vld [vmem:[%s9 + $0x4c] sm:$0xf]
        %v1868 = vld [vmem:[%s9 + $0x50] sm:$0xf]
        %v1869 = vld [vmem:[%s9 + $0x54] sm:$0xf]
        %v1870 = vld [vmem:[%s9 + $0x58] sm:$0xf]
        %v1871 = vld [vmem:[%s9 + $0x5c] sm:$0xf]
        %v1872 = vld [vmem:[%s9 + $0x60] sm:$0xf]
        %v1873 = vld [vmem:[%s9 + $0x64] sm:$0xf]
        %v1874 = vld [vmem:[%s9 + $0x68] sm:$0xf]
        %v1875 = vld [vmem:[%s9 + $0x6c] sm:$0xf]
        %v1876 = vld [vmem:[%s9 + $0x70] sm:$0xf]
        %v1877 = vld [vmem:[%s9 + $0x74] sm:$0xf]
        %v1878 = vld [vmem:[%s9 + $0x78] sm:$0xf]
        %v1879 = vld [vmem:[%s9 + $0x7c] sm:$0xf]
        %v1880 = vld [vmem:[%s10] sm:$0x1]
        %v1882 = vperm.slane %v1880, 0
        %v1916 = vunpack.c.l.b16 %v1848
        %v1917 = vunpack.c.l.b16 %v1849
        %v1918 = vunpack.c.l.b16 %v1850
        %v1919 = vunpack.c.l.b16 %v1851
        %v1920 = vunpack.c.l.b16 %v1852
        %v1921 = vunpack.c.l.b16 %v1853
        %v1922 = vunpack.c.l.b16 %v1854
        %v1923 = vunpack.c.l.b16 %v1855
        %v1924 = vunpack.c.l.b16 %v1856
        %v1925 = vunpack.c.l.b16 %v1857
        %v1926 = vunpack.c.l.b16 %v1858
        %v1927 = vunpack.c.l.b16 %v1859
        %v1928 = vunpack.c.l.b16 %v1860
        %v1929 = vunpack.c.l.b16 %v1861
        %v1930 = vunpack.c.l.b16 %v1862
        %v1931 = vunpack.c.l.b16 %v1863
        %v1932 = vunpack.c.l.b16 %v1864
        %v1933 = vunpack.c.l.b16 %v1865
        %v1934 = vunpack.c.l.b16 %v1866
        %v1935 = vunpack.c.l.b16 %v1867
        %v1936 = vunpack.c.l.b16 %v1868
        %v1937 = vunpack.c.l.b16 %v1869
        %v1938 = vunpack.c.l.b16 %v1870
        %v1939 = vunpack.c.l.b16 %v1871
        %v1940 = vunpack.c.l.b16 %v1872
        %v1941 = vunpack.c.l.b16 %v1873
        %v1942 = vunpack.c.l.b16 %v1874
        %v1943 = vunpack.c.l.b16 %v1875
        %v1944 = vunpack.c.l.b16 %v1876
        %v1945 = vunpack.c.l.b16 %v1877
        %v1946 = vunpack.c.l.b16 %v1878
        %v1947 = vunpack.c.l.b16 %v1879
        %v1948 = vpack.c.b16 %v1917, %v1916
        %v1949 = vpack.c.b16 %v1919, %v1918
        %v1950 = vpack.c.b16 %v1921, %v1920
        %v1951 = vpack.c.b16 %v1923, %v1922
        %v1952 = vpack.c.b16 %v1925, %v1924
        %v1953 = vpack.c.b16 %v1927, %v1926
        %v1954 = vpack.c.b16 %v1929, %v1928
        %v1955 = vpack.c.b16 %v1931, %v1930
        %v1956 = vpack.c.b16 %v1933, %v1932
        %v1957 = vpack.c.b16 %v1935, %v1934
        %v1958 = vpack.c.b16 %v1937, %v1936
        %v1959 = vpack.c.b16 %v1939, %v1938
        %v1960 = vpack.c.b16 %v1941, %v1940
        %v1961 = vpack.c.b16 %v1943, %v1942
        %v1962 = vpack.c.b16 %v1945, %v1944
        %v1963 = vpack.c.b16 %v1947, %v1946
        %1980 = vmatpush.bf16.msra.mxu0 %v1955
        %1981 = vmatpush.bf16.msra.mxu0 %v1954
        %1982 = vmatpush.bf16.msra.mxu0 %v1953
        %1983 = vmatpush.bf16.msra.mxu0 %v1952
        %1984 = vmatpush.bf16.msra.mxu0 %v1951
        %1985 = vmatpush.bf16.msra.mxu0 %v1950
        %1986 = vmatpush.bf16.msra.mxu0 %v1949
        %1987 = vmatpush.bf16.msra.mxu0 %v1948
        %1988 = vmatmul.bf16.gmra.mxu0 %v1832
        %v1989 = vpop.f32.mrf.mxu0
        %v1990 = vadd.f32 %v1882, %v1989
        %v1991 = vpop.f32.mrf.mxu0
        %v1992 = vadd.f32 %v1882, %v1991
        %1993 = vmatmul.bf16.gmra.mxu0 %v1834
        %v1994 = vpop.f32.mrf.mxu0
        %v1995 = vadd.f32 %v1882, %v1994
        %v1996 = vpop.f32.mrf.mxu0
        %v1997 = vadd.f32 %v1882, %v1996
        %1998 = vmatmul.bf16.gmra.mxu0 %v1836
        %v1999 = vpop.f32.mrf.mxu0
        %v2000 = vadd.f32 %v1882, %v1999
        %v2001 = vpop.f32.mrf.mxu0
        %v2002 = vadd.f32 %v1882, %v2001
        %2003 = vmatmul.bf16.gmra.mxu0 %v1838
        %v2004 = vpop.f32.mrf.mxu0
        %v2005 = vadd.f32 %v1882, %v2004
        %v2006 = vpop.f32.mrf.mxu0
        %v2007 = vadd.f32 %v1882, %v2006
        %2008 = vmatmul.bf16.gmra.mxu0 %v1840
        %v2009 = vpop.f32.mrf.mxu0
        %v2010 = vadd.f32 %v1882, %v2009
        %v2011 = vpop.f32.mrf.mxu0
        %v2012 = vadd.f32 %v1882, %v2011
        %2013 = vmatmul.bf16.gmra.mxu0 %v1842
        %v2014 = vpop.f32.mrf.mxu0
        %v2015 = vadd.f32 %v1882, %v2014
        %v2016 = vpop.f32.mrf.mxu0
        %v2017 = vadd.f32 %v1882, %v2016
        %2018 = vmatmul.bf16.gmra.mxu0 %v1844
        %v2019 = vpop.f32.mrf.mxu0
        %v2020 = vadd.f32 %v1882, %v2019
        %v2021 = vpop.f32.mrf.mxu0
        %v2022 = vadd.f32 %v1882, %v2021
        %2023 = vmatmul.bf16.gmra.mxu0 %v1846
        %v2024 = vpop.f32.mrf.mxu0
        %v2025 = vadd.f32 %v1882, %v2024
        %v2026 = vpop.f32.mrf.mxu0
        %v2027 = vadd.f32 %v1882, %v2026
        %2028 = vdwg.mxu0
        %2029 = vmatpush.bf16.msra.mxu0 %v1963
        %2030 = vmatpush.bf16.msra.mxu0 %v1962
        %2031 = vmatpush.bf16.msra.mxu0 %v1961
        %2032 = vmatpush.bf16.msra.mxu0 %v1960
        %2033 = vmatpush.bf16.msra.mxu0 %v1959
        %2034 = vmatpush.bf16.msra.mxu0 %v1958
        %2035 = vmatpush.bf16.msra.mxu0 %v1957
        %2036 = vmatpush.bf16.msra.mxu0 %v1956
        %2037 = vmatmul.bf16.gmra.mxu0 %v1833
        %v2038 = vpop.f32.mrf.mxu0
        %v2039 = vadd.f32 %v1990, %v2038
        %v2040 = vpop.f32.mrf.mxu0
        %v2041 = vadd.f32 %v1992, %v2040
        %2042 = vmatmul.bf16.gmra.mxu0 %v1835
        %v2043 = vpop.f32.mrf.mxu0
        %v2044 = vadd.f32 %v1995, %v2043
        %v2045 = vpop.f32.mrf.mxu0
        %v2046 = vadd.f32 %v1997, %v2045
        %2047 = vmatmul.bf16.gmra.mxu0 %v1837
        %v2048 = vpop.f32.mrf.mxu0
        %v2049 = vadd.f32 %v2000, %v2048
        %v2050 = vpop.f32.mrf.mxu0
        %v2051 = vadd.f32 %v2002, %v2050
        %2052 = vmatmul.bf16.gmra.mxu0 %v1839
        %v2053 = vpop.f32.mrf.mxu0
        %v2054 = vadd.f32 %v2005, %v2053
        %v2055 = vpop.f32.mrf.mxu0
        %v2056 = vadd.f32 %v2007, %v2055
        %2057 = vmatmul.bf16.gmra.mxu0 %v1841
        %v2058 = vpop.f32.mrf.mxu0
        %v2059 = vadd.f32 %v2010, %v2058
        %v2060 = vpop.f32.mrf.mxu0
        %v2061 = vadd.f32 %v2012, %v2060
        %2062 = vmatmul.bf16.gmra.mxu0 %v1843
        %v2063 = vpop.f32.mrf.mxu0
        %v2064 = vadd.f32 %v2015, %v2063
        %v2065 = vpop.f32.mrf.mxu0
        %v2066 = vadd.f32 %v2017, %v2065
        %2067 = vmatmul.bf16.gmra.mxu0 %v1845
        %v2068 = vpop.f32.mrf.mxu0
        %v2069 = vadd.f32 %v2020, %v2068
        %v2070 = vpop.f32.mrf.mxu0
        %v2071 = vadd.f32 %v2022, %v2070
        %2072 = vmatmul.bf16.gmra.mxu0 %v1847
        %v2073 = vpop.f32.mrf.mxu0
        %v2074 = vadd.f32 %v2025, %v2073
        %v2075 = vpop.f32.mrf.mxu0
        %v2076 = vadd.f32 %v2027, %v2075
        %2077 = vdwg.mxu0
        %v2078 = vpack.c.bf16 %v2039, %v2039
        %v2079 = vpack.c.bf16 %v2041, %v2041
        %v2080 = vpack.c.bf16 %v2044, %v2044
        %v2081 = vpack.c.bf16 %v2046, %v2046
        %v2082 = vpack.c.bf16 %v2049, %v2049
        %v2083 = vpack.c.bf16 %v2051, %v2051
        %v2084 = vpack.c.bf16 %v2054, %v2054
        %v2085 = vpack.c.bf16 %v2056, %v2056
        %v2086 = vpack.c.bf16 %v2059, %v2059
        %v2087 = vpack.c.bf16 %v2061, %v2061
        %v2088 = vpack.c.bf16 %v2064, %v2064
        %v2089 = vpack.c.bf16 %v2066, %v2066
        %v2090 = vpack.c.bf16 %v2069, %v2069
        %v2091 = vpack.c.bf16 %v2071, %v2071
        %v2092 = vpack.c.bf16 %v2074, %v2074
        %v2093 = vpack.c.bf16 %v2076, %v2076
        %2094 = vst [vmem:[%s382] sm:$0xf] %v2078
        %2095 = vst [vmem:[%s382 + $0x4] sm:$0xf] %v2079
        %2096 = vst [vmem:[%s382 + $0x8] sm:$0xf] %v2080
        %2097 = vst [vmem:[%s382 + $0xc] sm:$0xf] %v2081
        %2098 = vst [vmem:[%s382 + $0x10] sm:$0xf] %v2082
        %2099 = vst [vmem:[%s382 + $0x14] sm:$0xf] %v2083
        %2100 = vst [vmem:[%s382 + $0x18] sm:$0xf] %v2084
        %2101 = vst [vmem:[%s382 + $0x1c] sm:$0xf] %v2085
        %2102 = vst [vmem:[%s382 + $0x20] sm:$0xf] %v2086
        %2103 = vst [vmem:[%s382 + $0x24] sm:$0xf] %v2087
        %2104 = vst [vmem:[%s382 + $0x28] sm:$0xf] %v2088
        %2105 = vst [vmem:[%s382 + $0x2c] sm:$0xf] %v2089
        %2106 = vst [vmem:[%s382 + $0x30] sm:$0xf] %v2090
        %2107 = vst [vmem:[%s382 + $0x34] sm:$0xf] %v2091
        %2108 = vst [vmem:[%s382 + $0x38] sm:$0xf] %v2092
        %2109 = vst [vmem:[%s382 + $0x3c] sm:$0xf] %v2093
        %s2110 = sand.u32 %s269, 1
        %s2111 = scalar_lea.sflag [#allocation3], %s2110
        %s2112 = sand.u32 %s269, 1
        %s2113 = smul.addr %s2112, 64
        %s2114 = scalar_lea.vmem [#allocation2], %s2113
        // Predicated region
        $region65: #{tpu_custom_call.1} parent=63 // pred_check
          %p2115 = pneg %p279
        $region66: #{tpu_custom_call.1} parent=63 // pred_check_branch
          %2117 = sbr.rel (%p2115) target = $region68
        $region67: #{tpu_custom_call.1} parent=63 // pred_region
          %s2118 = smul.u32 16, %s25
          %2120 = vsyncadd %s2111, 0
          %s2121 = smul.addr %s2118, 4
          %s2122 = scalar_lea.hbm %s11, %s2121
          %s2123 = sshll.u32 %s2114, 4
          %s2124 = int_to_ptr.vmem [resolvable:$true] %s2123
          %s2125 = sshll.u32 %s2122, 4
          %s2126 = int_to_ptr.hbm [resolvable:$true] %s2125
          %2131 = dma.vmem_to_hbm [thread:$0]  %s2124, 1024, %s2126, %s2111, 64, 64, 4
        $region68: #{tpu_custom_call.1} parent=63 // pred_fallthru
          _
      $region64: #{tpu_custom_call.1} parent=5 // pred_fallthru
        _
      %p2132 = scmp.le.s32.totalorder 2, %s20
      // Predicated region
      $region69: #{tpu_custom_call.1} parent=5 // pred_check
        %p2133 = pneg %p2132
      $region70: #{tpu_custom_call.1} parent=5 // pred_check_branch
        %2135 = sbr.rel (%p2133) target = $region72
      $region71: #{tpu_custom_call.1} parent=5 // pred_region
        %s2136 = ssub.s32 %s20, 2
        // Predicated region
        $region73: #{tpu_custom_call.1} parent=71 // pred_check
          %p2137 = pneg %p285
        $region74: #{tpu_custom_call.1} parent=71 // pred_check_branch
          %2139 = sbr.rel (%p2137) target = $region76
        $region75: #{tpu_custom_call.1} parent=71 // pred_region
          %s2140 = sand.u32 %s270, 1
          %s2141 = scalar_lea.sflag [#allocation3], %s2140
          %s2142 = sand.u32 %s270, 1
          %s2143 = smul.addr %s2142, 64
          %s2144 = scalar_lea.vmem [#allocation2], %s2143
          %2146 = dma.done %s2141, 1024
        $region76: #{tpu_custom_call.1} parent=71 // pred_fallthru
          _
      $region72: #{tpu_custom_call.1} parent=5 // pred_fallthru
        _
    $region6: #{tpu_custom_call.1} parent=1 // loop_footer
      %s24 = sadd.s32 1, %s20
    $region7: #{tpu_custom_call.1} parent=1 // loop_footer_branch
      %19 = sbr.rel target = $region3
    $region8: #{tpu_custom_call.1} parent=1 // loop_exit
      _
    %2147 = vsyncpa [#allocation3], 1
    %s2148 = scalar_lea.sflag [#allocation3], 1
    %2149 = vsyncpa %s2148, 1

</llo_original>
